<compile_context>
chip_gen: v7x
topology: tpu7x:2x2x1
jax: 0.10.0
libtpu: 0.0.40
codegen_flags: <defaults>
</compile_context>

<pallas_src>
import functools

import jax
import jax.numpy as jnp
from jax.experimental import pallas as pl
from jax.experimental.pallas import tpu as pltpu

DROPOUT_P = 0.2


def _ffn_kernel(seed_ref, x_ref, w1_ref, b1_ref, w2_ref, b2_ref, o_ref, acc_ref,
                *, training: bool, dropout_p: float):
    # x_ref:  (tm, C)   bf16 VMEM
    # w1_ref: (C, th)   bf16 VMEM (streamed over the H grid axis)
    # b1_ref: (1, th)   f32  VMEM
    # w2_ref: (th, C)   bf16 VMEM (streamed over the H grid axis)
    # b2_ref: (1, C)    f32  VMEM
    # o_ref:  (tm, C)   out dtype, resident across the H axis
    # acc_ref:(tm, C)   f32 scratch accumulator
    hb = pl.program_id(1)

    @pl.when(hb == 0)
    def _():
        acc_ref[...] = jnp.zeros_like(acc_ref)

    # hidden block: relu(x @ W1[:, h_tile] + b1[h_tile])  -- f32 accumulation
    h = jnp.dot(x_ref[...], w1_ref[...], preferred_element_type=jnp.float32)
    h = jnp.maximum(h + b1_ref[...], 0.0)

    # partial second matmul, accumulated in f32 across H tiles
    acc_ref[...] += jnp.dot(h.astype(w2_ref.dtype), w2_ref[...],
                            preferred_element_type=jnp.float32)

    @pl.when(hb == pl.num_programs(1) - 1)
    def _():
        out = acc_ref[...] + b2_ref[...]
        if training and dropout_p > 0.0:
            # Inverted dropout with the TPU hardware PRNG.
            # TODO(synk): RNG stream differs from torch.nn.Dropout's; semantics
            # (Bernoulli keep-prob 1-p, scale by 1/(1-p)) match. Mask also
            # depends on the row-tile size (seed is per row tile).
            pltpu.prng_seed(seed_ref[0] + pl.program_id(0))
            bits = pltpu.bitcast(pltpu.prng_random_bits(out.shape), jnp.uint32)
            thresh = jnp.uint32(int(round(dropout_p * 4294967296.0)))
            keep = bits >= thresh                      # P(keep) = 1 - p
            out = jnp.where(keep, out * (1.0 / (1.0 - dropout_p)), 0.0)
        o_ref[...] = out.astype(o_ref.dtype)


def feed_forward(x, w1, b1, w2, b2, *, training=False, dropout_p=DROPOUT_P, seed=0):
    """x: (B, T, C) float32. Returns (B, T, C)."""
    B, T, C = x.shape
    H = w1.shape[1]
    assert w1.shape == (C, H) and w2.shape == (H, C)

    M = B * T
    xf = x.reshape(M, C)

    # --- row tiling: up to 256 rows per tile, pad M to a multiple of it -----
    TM_MAX = 256
    if M <= TM_MAX:
        tm = ((M + 7) // 8) * 8           # multiple of 8 (sublane constraint)
    else:
        tm = TM_MAX
    n_row = pl.cdiv(M, tm)
    M_pad = n_row * tm
    if M_pad != M:
        xf = jnp.pad(xf, ((0, M_pad - M), (0, 0)))

    # --- hidden tiling: stream W1/W2 in th-wide column/row slabs ------------
    th = 512 if (H % 512 == 0) else H
    n_h = H // th

    # bf16 MXU inputs; biases stay f32 and are added after the f32-accum dots.
    xb = xf.astype(jnp.bfloat16)
    w1b = w1.astype(jnp.bfloat16)
    w2b = w2.astype(jnp.bfloat16)
    b1_2d = b1.reshape(1, H).astype(jnp.float32)
    b2_2d = b2.reshape(1, C).astype(jnp.float32)
    seed_arr = jnp.array([seed], dtype=jnp.int32)

    kernel = functools.partial(_ffn_kernel, training=training, dropout_p=dropout_p)

    out = pl.pallas_call(
        kernel,
        out_shape=jax.ShapeDtypeStruct((M_pad, C), x.dtype),
        grid_spec=pltpu.PrefetchScalarGridSpec(
            num_scalar_prefetch=1,              # dropout seed lives in SMEM
            grid=(n_row, n_h),                  # H (reduction) axis last
            in_specs=[
                pl.BlockSpec((tm, C), lambda i, h, seed: (i, 0)),   # x tile
                pl.BlockSpec((C, th), lambda i, h, seed: (0, h)),   # W1 slab (streamed, double-buffered)
                pl.BlockSpec((1, th), lambda i, h, seed: (0, h)),   # b1 slab
                pl.BlockSpec((th, C), lambda i, h, seed: (h, 0)),   # W2 slab (streamed, double-buffered)
                pl.BlockSpec((1, C), lambda i, h, seed: (0, 0)),    # b2
            ],
            out_specs=pl.BlockSpec((tm, C), lambda i, h, seed: (i, 0)),
            scratch_shapes=[pltpu.VMEM((tm, C), jnp.float32)],      # f32 accumulator
        ),
        compiler_params=pltpu.CompilerParams(
            dimension_semantics=("parallel", "arbitrary"),
            vmem_limit_bytes=48 * 1024 * 1024,
        ),
    )(seed_arr, xb, w1b, b1_2d, w2b, b2_2d)

    if M_pad != M:
        out = out[:M]
    return out.reshape(B, T, C)


def init_params(key, n_embed):
    """Deterministic init matching nn.Linear's default U(-1/sqrt(fan_in), 1/sqrt(fan_in))."""
    h = n_embed * 4
    k1, k2, k3, k4 = jax.random.split(key, 4)
    lim1 = 1.0 / jnp.sqrt(jnp.float32(n_embed))
    lim2 = 1.0 / jnp.sqrt(jnp.float32(h))
    w1 = jax.random.uniform(k1, (n_embed, h), jnp.float32, -lim1, lim1)
    b1 = jax.random.uniform(k2, (h,), jnp.float32, -lim1, lim1)
    w2 = jax.random.uniform(k3, (h, n_embed), jnp.float32, -lim2, lim2)
    b2 = jax.random.uniform(k4, (n_embed,), jnp.float32, -lim2, lim2)
    return w1, b1, w2, b2


if __name__ == "__main__":
    key = jax.random.PRNGKey(0)
    B, T, C = 2, 8, 512  # small batch/seq, n_embed = 512 as in the module

    kx, kp = jax.random.split(key)
    x = jax.random.normal(kx, (B, T, C), jnp.float32)
    w1, b1, w2, b2 = init_params(kp, C)

    # Inference-mode forward (dropout is identity in eval; set training=True
    # to enable PRNG-based inverted dropout inside the kernel).
    y = feed_forward(x, w1, b1, w2, b2, training=False)
    jax.block_until_ready(y)

    # Cross-check against a plain-JAX reference using the same bf16-input /
    # f32-accumulation recipe (eval mode).
    M = B * T
    xb = x.reshape(M, C).astype(jnp.bfloat16)
    h_ref = jnp.maximum(
        jnp.dot(xb, w1.astype(jnp.bfloat16), preferred_element_type=jnp.float32) + b1,
        0.0)
    y_ref = jnp.dot(h_ref.astype(jnp.bfloat16), w2.astype(jnp.bfloat16),
                    preferred_element_type=jnp.float32) + b2
    y_ref = y_ref.reshape(B, T, C)
    assert jnp.allclose(y, y_ref, atol=2e-2, rtol=2e-2), "mismatch vs reference"

    print("KERNEL_OK")
</pallas_src>

<mosaic_0001>
module attributes {stable_mosaic.version = 11 : i64} {
  func.func @_ffn_kernel(%arg0: i32, %arg1: i32, %arg2: memref<1xi32, #tpu.memory_space<smem>>, %arg3: memref<16x512xbf16, #tpu.memory_space<vmem>>, %arg4: memref<512x512xbf16, #tpu.memory_space<vmem>>, %arg5: memref<1x512xf32, #tpu.memory_space<vmem>>, %arg6: memref<512x512xbf16, #tpu.memory_space<vmem>>, %arg7: memref<1x512xf32, #tpu.memory_space<vmem>>, %arg8: memref<16x512xf32, #tpu.memory_space<vmem>>, %arg9: memref<16x512xf32, #tpu.memory_space<vmem>>) attributes {dimension_semantics = [#tpu.dimension_semantics<parallel>, #tpu.dimension_semantics<arbitrary>], iteration_bounds = array<i64: 1, 4>, scalar_prefetch = 1 : i64, scratch_operands = 1 : i64, tpu.core_type = #tpu.core_type<tc>, window_params = [{transform_indices = @transform_0, window_bounds = array<i64: 16, 512>}, {transform_indices = @transform_1, window_bounds = array<i64: 512, 512>}, {transform_indices = @transform_2, window_bounds = array<i64: 1, 512>}, {transform_indices = @transform_3, window_bounds = array<i64: 512, 512>}, {pipeline_mode = #tpu.pipeline_mode<synchronous>, transform_indices = @transform_4, window_bounds = array<i64: 1, 512>}, {transform_indices = @transform_5, window_bounds = array<i64: 16, 512>}]} {
    %c0_i32 = arith.constant 0 : i32
    %0 = arith.cmpi eq, %arg1, %c0_i32 : i32
    %1 = arith.extui %0 : i1 to i32
    %c0_i32_0 = arith.constant 0 : i32
    %2 = arith.cmpi ne, %1, %c0_i32_0 : i32
    scf.if %2 {
      %cst_15 = arith.constant 0.000000e+00 : f32
      %20 = vector.broadcast %cst_15 : f32 to vector<16x512xf32>
      %c0_16 = arith.constant 0 : index
      %c0_17 = arith.constant 0 : index
      %21 = vector.load %arg9[%c0_16, %c0_17] : memref<16x512xf32, #tpu.memory_space<vmem>>, vector<16x512xf32>
      tpu.vector_store %arg9[%c0_16, %c0_17], %20 {strides = array<i32>} : memref<16x512xf32, #tpu.memory_space<vmem>>, vector<16x512xf32>,
    } else {
    }
    %c0 = arith.constant 0 : index
    %c0_1 = arith.constant 0 : index
    %3 = vector.load %arg3[%c0, %c0_1] : memref<16x512xbf16, #tpu.memory_space<vmem>>, vector<16x512xbf16>
    %c0_2 = arith.constant 0 : index
    %c0_3 = arith.constant 0 : index
    %4 = vector.load %arg4[%c0_2, %c0_3] : memref<512x512xbf16, #tpu.memory_space<vmem>>, vector<512x512xbf16>
    %cst = arith.constant dense<0.000000e+00> : vector<16x512xf32>
    %5 = tpu.matmul %3, %4, %cst {dimension_numbers = #tpu.dot_dimension_numbers<[1], [0], [0], [1], [0, 0, 1, 1], [], []>} : vector<16x512xbf16>, vector<512x512xbf16>, vector<16x512xf32> -> vector<16x512xf32>
    %c0_4 = arith.constant 0 : index
    %c0_5 = arith.constant 0 : index
    %6 = vector.load %arg5[%c0_4, %c0_5] : memref<1x512xf32, #tpu.memory_space<vmem>>, vector<1x512xf32>
    %7 = vector.broadcast %6 : vector<1x512xf32> to vector<16x512xf32>
    %8 = arith.addf %5, %7 : vector<16x512xf32>
    %cst_6 = arith.constant 0.000000e+00 : f32
    %9 = vector.broadcast %cst_6 : f32 to vector<16x512xf32>
    %10 = arith.maximumf %8, %9 : vector<16x512xf32>
    %c0_7 = arith.constant 0 : index
    %c0_8 = arith.constant 0 : index
    %11 = vector.load %arg9[%c0_7, %c0_8] : memref<16x512xf32, #tpu.memory_space<vmem>>, vector<16x512xf32>
    %12 = arith.truncf %10 : vector<16x512xf32> to vector<16x512xbf16>
    %c0_9 = arith.constant 0 : index
    %c0_10 = arith.constant 0 : index
    %13 = vector.load %arg6[%c0_9, %c0_10] : memref<512x512xbf16, #tpu.memory_space<vmem>>, vector<512x512xbf16>
    %cst_11 = arith.constant dense<0.000000e+00> : vector<16x512xf32>
    %14 = tpu.matmul %12, %13, %cst_11 {dimension_numbers = #tpu.dot_dimension_numbers<[1], [0], [0], [1], [0, 0, 1, 1], [], []>} : vector<16x512xbf16>, vector<512x512xbf16>, vector<16x512xf32> -> vector<16x512xf32>
    %15 = arith.addf %11, %14 : vector<16x512xf32>
    %c0_12 = arith.constant 0 : index
    %c0_13 = arith.constant 0 : index
    %16 = vector.load %arg9[%c0_12, %c0_13] : memref<16x512xf32, #tpu.memory_space<vmem>>, vector<16x512xf32>
    tpu.vector_store %arg9[%c0_12, %c0_13], %15 {strides = array<i32>} : memref<16x512xf32, #tpu.memory_space<vmem>>, vector<16x512xf32>,
    %c3_i32 = arith.constant 3 : i32
    %17 = arith.cmpi eq, %arg1, %c3_i32 : i32
    %18 = arith.extui %17 : i1 to i32
    %c0_i32_14 = arith.constant 0 : i32
    %19 = arith.cmpi ne, %18, %c0_i32_14 : i32
    scf.if %19 {
      %c0_15 = arith.constant 0 : index
      %c0_16 = arith.constant 0 : index
      %20 = vector.load %arg9[%c0_15, %c0_16] : memref<16x512xf32, #tpu.memory_space<vmem>>, vector<16x512xf32>
      %c0_17 = arith.constant 0 : index
      %c0_18 = arith.constant 0 : index
      %21 = vector.load %arg7[%c0_17, %c0_18] : memref<1x512xf32, #tpu.memory_space<vmem>>, vector<1x512xf32>
      %22 = vector.broadcast %21 : vector<1x512xf32> to vector<16x512xf32>
      %23 = arith.addf %20, %22 : vector<16x512xf32>
      %c0_19 = arith.constant 0 : index
      %c0_20 = arith.constant 0 : index
      %24 = vector.load %arg8[%c0_19, %c0_20] : memref<16x512xf32, #tpu.memory_space<vmem>>, vector<16x512xf32>
      tpu.vector_store %arg8[%c0_19, %c0_20], %23 {strides = array<i32>} : memref<16x512xf32, #tpu.memory_space<vmem>>, vector<16x512xf32>,
    } else {
    }
    return
  }
  func.func @transform_0(%arg0: i32, %arg1: i32, %arg2: memref<1xi32, #tpu.memory_space<smem>>) -> (i32, i32) {
    %c0_i32 = arith.constant 0 : i32
    %c0_i32_0 = arith.constant 0 : i32
    return %arg0, %c0_i32 : i32, i32
  }
  func.func @transform_1(%arg0: i32, %arg1: i32, %arg2: memref<1xi32, #tpu.memory_space<smem>>) -> (i32, i32) {
    %c0_i32 = arith.constant 0 : i32
    %c0_i32_0 = arith.constant 0 : i32
    return %c0_i32, %arg1 : i32, i32
  }
  func.func @transform_2(%arg0: i32, %arg1: i32, %arg2: memref<1xi32, #tpu.memory_space<smem>>) -> (i32, i32) {
    %c0_i32 = arith.constant 0 : i32
    %c0_i32_0 = arith.constant 0 : i32
    return %c0_i32, %arg1 : i32, i32
  }
  func.func @transform_3(%arg0: i32, %arg1: i32, %arg2: memref<1xi32, #tpu.memory_space<smem>>) -> (i32, i32) {
    %c0_i32 = arith.constant 0 : i32
    %c0_i32_0 = arith.constant 0 : i32
    return %arg1, %c0_i32 : i32, i32
  }
  func.func @transform_4(%arg0: i32, %arg1: i32, %arg2: memref<1xi32, #tpu.memory_space<smem>>) -> (i32, i32) {
    %c0_i32 = arith.constant 0 : i32
    %c0_i32_0 = arith.constant 0 : i32
    %c0_i32_1 = arith.constant 0 : i32
    return %c0_i32, %c0_i32_0 : i32, i32
  }
  func.func @transform_5(%arg0: i32, %arg1: i32, %arg2: memref<1xi32, #tpu.memory_space<smem>>) -> (i32, i32) {
    %c0_i32 = arith.constant 0 : i32
    %c0_i32_0 = arith.constant 0 : i32
    return %arg0, %c0_i32 : i32, i32
  }
}

</mosaic_0001>

<llo_original>
// kernel: tpu_custom_call.1
$region0: #{tpu_custom_call.1}
  #allocation0 [shape = 'u32[]', space=smem, size = 0x4, offset = 0x4, fixed_abs, tag = 'smem constant byte address 0x4 - core index']
  #allocation1 [shape = 'u32[144,128]{1,0:T(1,128)}', space=vmem, size = 0x12000, scoped, tag = 'internal scratch']
  #allocation2 [shape = 'f32[16,512]{1,0:T(8,128)}', space=vmem, size = 0x8000, scoped, tag = 'scratch operand']
  #allocation3 [shape = 's32[1]{0}', space=sflag, size = 0x4, scoped, tag = 'scoped memory for tpu_custom_call.1']
  #allocation4 [shape = 's32[1]{0:T(128)S(6)}', space=smem, size = 0x200, scoped, tag = 'prefetched SMEM operand 0']
  %s0 = inlined_call_operand.<no memory space> [shape: s32[1], index: 0, kind: input, shape index: {}]
  %s1 = inlined_call_operand.hbm [shape: bf16[16,512], index: 1, kind: input, shape index: {}]
  %s2 = inlined_call_operand.hbm [shape: bf16[512,2048], index: 2, kind: input, shape index: {}]
  %s3 = inlined_call_operand.hbm [shape: f32[1,2048], index: 3, kind: input, shape index: {}]
  %s4 = inlined_call_operand.hbm [shape: bf16[2048,512], index: 4, kind: input, shape index: {}]
  %s5 = inlined_call_operand.hbm [shape: f32[1,512], index: 5, kind: input, shape index: {}]
  %s6 = inlined_call_operand.hbm [shape: f32[16,512], index: 6, kind: output, shape index: {}]
  %s7 = sld [smem:[#allocation0]]
  $region81: #{tpu_custom_call.1} parent=0
    _
  %s9 = ssub.s32 1, %s7
  %s10 = scalar_select 0, %s9, %s7
  %11 = sst [smem:[#allocation4]] %s0
  $region1: #{tpu_custom_call.1} parent=0
    #allocation5 [shape = 'u8[16384]{0}', space=vmem, size = 0x4000, scoped, tag = 'input window, operand 1, single buffered']
    #allocation6 [shape = 's32[2]{0}', space=sflag, size = 0x8, scoped, tag = 'scoped memory for tpu_custom_call.1']
    #allocation7 [shape = 's32[2]{0}', space=sflag, size = 0x8, scoped, tag = 'scoped memory for tpu_custom_call.1']
    #allocation8 [shape = 'u8[1048576]{0}', space=vmem, size = 0x100000, scoped, tag = 'input window, operand 2']
    #allocation9 [shape = 's32[2]{0}', space=sflag, size = 0x8, scoped, tag = 'scoped memory for tpu_custom_call.1']
    #allocation10 [shape = 'u8[4096]{0}', space=vmem, size = 0x1000, scoped, tag = 'input window, operand 3']
    #allocation11 [shape = 'u8[1048576]{0}', space=vmem, size = 0x100000, scoped, tag = 'input window, operand 4']
    #allocation12 [shape = 's32[2]{0}', space=sflag, size = 0x8, scoped, tag = 'scoped memory for tpu_custom_call.1']
    #allocation13 [shape = 'u8[2048]{0}', space=vmem, size = 0x800, scoped, tag = 'input window, operand 5, single buffered']
    #allocation14 [shape = 'u8[32768]{0}', space=vmem, size = 0x8000, scoped, tag = 'output window, operand 0, single buffered']
    %12 = vsyncpa [#allocation6], 0
    %13 = vsyncpa [#allocation9], 0
    %s14 = scalar_lea.sflag [#allocation9], 1
    %15 = vsyncpa %s14, 0
    %16 = vsyncpa [#allocation12], 0
    %s17 = scalar_lea.sflag [#allocation12], 1
    %18 = vsyncpa %s17, 0
    %19 = vsyncpa [#allocation7], 0
    loop: start=0, step=1, limit=6
    $region2: #{tpu_custom_call.1} parent=1 // loop_pre_header
      _
    $region3: #{tpu_custom_call.1} parent=1 // loop_header
      %s21 = sphi 0, %s25
      %p22 = scmp.ge.s32.totalorder %s21, 6
      %s28 = sphi 0, %s40
      %s29 = sphi 0, %s36
      %s30 = sphi 0, %s28
      %s31 = sphi 0, %s29
      %s32 = sphi 0, %s30
      %s33 = sphi 0, %s31
      %s43 = sphi 0, %s45
      %s46 = sphi 0, %s43
      %s47 = sphi 0, %s46
      %s63 = sphi 0, %s47
      %s69 = sphi 0, %s71
      %s72 = sphi 0, %s69
      %s73 = sphi 0, %s72
      %s89 = sphi 0, %s73
      %s95 = sphi 0, %s97
      %s98 = sphi 0, %s95
      %s99 = sphi 0, %s98
      %s115 = sphi 0, %s99
      %s121 = sphi 0, %s123
      %s124 = sphi 0, %s121
      %s125 = sphi 0, %s124
      %s141 = sphi 0, %s125
      %s145 = sphi 0, %s145
      %s147 = sphi 0, %s145
      %s148 = sphi 0, %s147
      %s162 = sphi 0, %s148
      %s168 = sphi 0, %s170
      %s171 = sphi 0, %s168
      %s172 = sphi 0, %s171
      %s188 = sphi 0, %s172
    $region4: #{tpu_custom_call.1} parent=1 // loop_header_branch
      %24 = sbr.rel (%p22) target = $region8
    $region5: #{tpu_custom_call.1} parent=1 // loop_body
      %s26 = ssub.s32 %s21, 1
      %s27 = ssub.s32 %s21, 2
      %s34 = sadd.s32 1, %s29
      %p35 = scmp.ge.s32.totalorder %s34, 4
      %s36 = scalar_select %p35, 0, %s34
      %s37 = sadd.s32 1, %s28
      %s38 = scalar_select %p35, %s37, %s28
      %p39 = scmp.ge.s32.totalorder %s38, 1
      %s40 = scalar_select %p39, 0, %s38
      %s41 = ssub.s32 %s28, %s40
      %p42 = scmp.eq.s32.totalorder %s41, 0
      %s44 = sadd.s32 %s43, 1
      %s45 = scalar_select %p42, %s43, %s44
      %p48 = pneg %p42
      %p49 = scmp.eq.s32.totalorder %s21, 3
      %p50 = por %p48, %p49
      %p51 = scmp.ne.s32.totalorder %s43, %s46
      %p52 = scmp.eq.s32.totalorder %s21, 0
      %p53 = por %p51, %p52
      %p54 = scmp.ne.s32.totalorder %s43, %s46
      %p55 = scmp.eq.s32.totalorder %s26, 3
      %p56 = por %p54, %p55
      %p57 = scmp.ne.s32.totalorder %s46, %s47
      %p58 = scmp.eq.s32.totalorder %s26, 0
      %p59 = por %p57, %p58
      %p60 = scmp.ne.s32.totalorder %s46, %s47
      %p61 = scmp.eq.s32.totalorder %s27, 3
      %p62 = por %p60, %p61
      %p64 = scmp.ne.s32.totalorder %s47, %s63
      %p65 = scmp.eq.s32.totalorder %s27, 0
      %p66 = por %p64, %p65
      %s67 = ssub.s32 %s29, %s36
      %p68 = scmp.eq.s32.totalorder %s67, 0
      %s70 = sadd.s32 %s69, 1
      %s71 = scalar_select %p68, %s69, %s70
      %p74 = pneg %p68
      %p75 = scmp.eq.s32.totalorder %s21, 3
      %p76 = por %p74, %p75
      %p77 = scmp.ne.s32.totalorder %s69, %s72
      %p78 = scmp.eq.s32.totalorder %s21, 0
      %p79 = por %p77, %p78
      %p80 = scmp.ne.s32.totalorder %s69, %s72
      %p81 = scmp.eq.s32.totalorder %s26, 3
      %p82 = por %p80, %p81
      %p83 = scmp.ne.s32.totalorder %s72, %s73
      %p84 = scmp.eq.s32.totalorder %s26, 0
      %p85 = por %p83, %p84
      %p86 = scmp.ne.s32.totalorder %s72, %s73
      %p87 = scmp.eq.s32.totalorder %s27, 3
      %p88 = por %p86, %p87
      %p90 = scmp.ne.s32.totalorder %s73, %s89
      %p91 = scmp.eq.s32.totalorder %s27, 0
      %p92 = por %p90, %p91
      %s93 = ssub.s32 %s29, %s36
      %p94 = scmp.eq.s32.totalorder %s93, 0
      %s96 = sadd.s32 %s95, 1
      %s97 = scalar_select %p94, %s95, %s96
      %p100 = pneg %p94
      %p101 = scmp.eq.s32.totalorder %s21, 3
      %p102 = por %p100, %p101
      %p103 = scmp.ne.s32.totalorder %s95, %s98
      %p104 = scmp.eq.s32.totalorder %s21, 0
      %p105 = por %p103, %p104
      %p106 = scmp.ne.s32.totalorder %s95, %s98
      %p107 = scmp.eq.s32.totalorder %s26, 3
      %p108 = por %p106, %p107
      %p109 = scmp.ne.s32.totalorder %s98, %s99
      %p110 = scmp.eq.s32.totalorder %s26, 0
      %p111 = por %p109, %p110
      %p112 = scmp.ne.s32.totalorder %s98, %s99
      %p113 = scmp.eq.s32.totalorder %s27, 3
      %p114 = por %p112, %p113
      %p116 = scmp.ne.s32.totalorder %s99, %s115
      %p117 = scmp.eq.s32.totalorder %s27, 0
      %p118 = por %p116, %p117
      %s119 = ssub.s32 %s29, %s36
      %p120 = scmp.eq.s32.totalorder %s119, 0
      %s122 = sadd.s32 %s121, 1
      %s123 = scalar_select %p120, %s121, %s122
      %p126 = pneg %p120
      %p127 = scmp.eq.s32.totalorder %s21, 3
      %p128 = por %p126, %p127
      %p129 = scmp.ne.s32.totalorder %s121, %s124
      %p130 = scmp.eq.s32.totalorder %s21, 0
      %p131 = por %p129, %p130
      %p132 = scmp.ne.s32.totalorder %s121, %s124
      %p133 = scmp.eq.s32.totalorder %s26, 3
      %p134 = por %p132, %p133
      %p135 = scmp.ne.s32.totalorder %s124, %s125
      %p136 = scmp.eq.s32.totalorder %s26, 0
      %p137 = por %p135, %p136
      %p138 = scmp.ne.s32.totalorder %s124, %s125
      %p139 = scmp.eq.s32.totalorder %s27, 3
      %p140 = por %p138, %p139
      %p142 = scmp.ne.s32.totalorder %s125, %s141
      %p143 = scmp.eq.s32.totalorder %s27, 0
      %p144 = por %p142, %p143
      %s146 = sadd.s32 %s145, 1
      %p149 = scmp.eq.s32.totalorder %s21, 3
      %p150 = scmp.ne.s32.totalorder %s145, %s147
      %p151 = scmp.eq.s32.totalorder %s21, 0
      %p152 = por %p150, %p151
      %p153 = scmp.ne.s32.totalorder %s145, %s147
      %p154 = scmp.eq.s32.totalorder %s26, 3
      %p155 = por %p153, %p154
      %p156 = scmp.ne.s32.totalorder %s147, %s148
      %p157 = scmp.eq.s32.totalorder %s26, 0
      %p158 = por %p156, %p157
      %p159 = scmp.ne.s32.totalorder %s147, %s148
      %p160 = scmp.eq.s32.totalorder %s27, 3
      %p161 = por %p159, %p160
      %p163 = scmp.ne.s32.totalorder %s148, %s162
      %p164 = scmp.eq.s32.totalorder %s27, 0
      %p165 = por %p163, %p164
      %s166 = ssub.s32 %s28, %s40
      %p167 = scmp.eq.s32.totalorder %s166, 0
      %s169 = sadd.s32 %s168, 1
      %s170 = scalar_select %p167, %s168, %s169
      %p173 = pneg %p167
      %p174 = scmp.eq.s32.totalorder %s21, 3
      %p175 = por %p173, %p174
      %p176 = scmp.ne.s32.totalorder %s168, %s171
      %p177 = scmp.eq.s32.totalorder %s21, 0
      %p178 = por %p176, %p177
      %p179 = scmp.ne.s32.totalorder %s168, %s171
      %p180 = scmp.eq.s32.totalorder %s26, 3
      %p181 = por %p179, %p180
      %p182 = scmp.ne.s32.totalorder %s171, %s172
      %p183 = scmp.eq.s32.totalorder %s26, 0
      %p184 = por %p182, %p183
      %p185 = scmp.ne.s32.totalorder %s171, %s172
      %p186 = scmp.eq.s32.totalorder %s27, 3
      %p187 = por %p185, %p186
      %p189 = scmp.ne.s32.totalorder %s172, %s188
      %p190 = scmp.eq.s32.totalorder %s27, 0
      %p191 = por %p189, %p190
      %p192 = scmp.le.s32.totalorder 1, %s21
      %p193 = scmp.lt.s32.totalorder %s21, 5
      %p194 = pnand %p192, %p193
      %p195 = pneg %p194
      // Predicated region
      $region9: #{tpu_custom_call.1} parent=5 // pred_check
        _
      $region10: #{tpu_custom_call.1} parent=5 // pred_check_branch
        %197 = sbr.rel (%p194) target = $region12
      $region11: #{tpu_custom_call.1} parent=5 // pred_region
        %s198 = ssub.s32 %s21, 1
        // Predicated region
        $region13: #{tpu_custom_call.1} parent=11 // pred_check
          %p199 = pneg %p59
        $region14: #{tpu_custom_call.1} parent=11 // pred_check_branch
          %201 = sbr.rel (%p199) target = $region16
        $region15: #{tpu_custom_call.1} parent=11 // pred_region
          %s202 = smul.u32 2, %s30
          %s204 = ssub.s32 512, 512
          %205 = vsyncadd [#allocation6], %s204
          %s206 = smul.addr %s202, 4
          %s207 = smul.addr %s206, 64
          %s208 = scalar_lea.hbm %s1, %s207
          %s209 = sshll.u32 [#allocation5], 4
          %s210 = int_to_ptr.vmem [resolvable:$true] %s209
          %215 = dma.hbm_to_vmem [thread:$0]  %s208, 512, %s210, [#allocation6], 256, 256, 16
        $region16: #{tpu_custom_call.1} parent=11 // pred_fallthru
          _
        // Predicated region
        $region17: #{tpu_custom_call.1} parent=11 // pred_check
          %p216 = pneg %p158
        $region18: #{tpu_custom_call.1} parent=11 // pred_check_branch
          %218 = sbr.rel (%p216) target = $region20
        $region19: #{tpu_custom_call.1} parent=11 // pred_region
          %s220 = ssub.s32 64, 64
          %221 = vsyncadd [#allocation12], %s220
          %s223 = sshll.u32 [#allocation13], 4
          %s224 = int_to_ptr.vmem [resolvable:$true] %s223
          %226 = dma.hbm_to_vmem [thread:$0]  %s5, 64, %s224, [#allocation12]
        $region20: #{tpu_custom_call.1} parent=11 // pred_fallthru
          _
      $region12: #{tpu_custom_call.1} parent=5 // pred_fallthru
        _
      %p227 = scmp.lt.s32.totalorder %s21, 4
      // Predicated region
      $region21: #{tpu_custom_call.1} parent=5 // pred_check
        %p228 = pneg %p227
      $region22: #{tpu_custom_call.1} parent=5 // pred_check_branch
        %230 = sbr.rel (%p228) target = $region24
      $region23: #{tpu_custom_call.1} parent=5 // pred_region
        // Predicated region
        $region25: #{tpu_custom_call.1} parent=23 // pred_check
          %p231 = pneg %p79
        $region26: #{tpu_custom_call.1} parent=23 // pred_check_branch
          %233 = sbr.rel (%p231) target = $region28
        $region27: #{tpu_custom_call.1} parent=23 // pred_region
          %s234 = sand.u32 %s21, 1
          %s235 = scalar_lea.sflag [#allocation9], %s234
          %s236 = sand.u32 %s69, 1
          %s237 = smul.addr %s236, 1024
          %s238 = scalar_lea.vmem [#allocation8], %s237
          %s239 = smul.u32 4, %s29
          %s241 = ssub.s32 16384, 16384
          %242 = vsyncadd %s235, %s241
          %s243 = smul.addr %s239, 64
          %s244 = scalar_lea.hbm %s2, %s243
          %s245 = sshll.u32 %s238, 4
          %s246 = int_to_ptr.vmem [resolvable:$true] %s245
          %251 = dma.hbm_to_vmem [thread:$0]  %s244, 16384, %s246, %s235, 1024, 256, 16
        $region28: #{tpu_custom_call.1} parent=23 // pred_fallthru
          _
        // Predicated region
        $region29: #{tpu_custom_call.1} parent=23 // pred_check
          %p252 = pneg %p105
        $region30: #{tpu_custom_call.1} parent=23 // pred_check_branch
          %254 = sbr.rel (%p252) target = $region32
        $region31: #{tpu_custom_call.1} parent=23 // pred_region
          %s255 = sand.u32 %s21, 1
          %s256 = scalar_lea.sflag [#allocation9], %s255
          %s257 = sand.u32 %s95, 1
          %s258 = smul.addr %s257, 4
          %s259 = scalar_lea.vmem [#allocation10], %s258
          %s260 = smul.u32 4, %s29
          %s262 = ssub.s32 64, 64
          %263 = vsyncadd %s256, %s262
          %s264 = smul.addr %s260, 16
          %s265 = scalar_lea.hbm %s3, %s264
          %s267 = sshll.u32 %s259, 4
          %s268 = int_to_ptr.vmem [resolvable:$true] %s267
          %270 = dma.hbm_to_vmem [thread:$0]  %s265, 64, %s268, %s256
        $region32: #{tpu_custom_call.1} parent=23 // pred_fallthru
          _
        // Predicated region
        $region33: #{tpu_custom_call.1} parent=23 // pred_check
          %p271 = pneg %p131
        $region34: #{tpu_custom_call.1} parent=23 // pred_check_branch
          %273 = sbr.rel (%p271) target = $region36
        $region35: #{tpu_custom_call.1} parent=23 // pred_region
          %s274 = sand.u32 %s21, 1
          %s275 = scalar_lea.sflag [#allocation12], %s274
          %s276 = sand.u32 %s121, 1
          %s277 = smul.addr %s276, 1024
          %s278 = scalar_lea.vmem [#allocation11], %s277
          %s279 = smul.u32 64, %s29
          %s281 = ssub.s32 16384, 16384
          %282 = vsyncadd %s275, %s281
          %s283 = smul.addr %s279, 4
          %s284 = smul.addr %s283, 64
          %s285 = scalar_lea.hbm %s4, %s284
          %s286 = sshll.u32 %s278, 4
          %s287 = int_to_ptr.vmem [resolvable:$true] %s286
          %292 = dma.hbm_to_vmem [thread:$0]  %s285, 16384, %s287, %s275, 256, 256, 16
        $region36: #{tpu_custom_call.1} parent=23 // pred_fallthru
          _
      $region24: #{tpu_custom_call.1} parent=5 // pred_fallthru
        _
      %p293 = scmp.le.s32.totalorder 1, %s21
      %p294 = scmp.lt.s32.totalorder %s21, 5
      %p295 = pnand %p293, %p294
      %p296 = pneg %p295
      // Predicated region
      $region37: #{tpu_custom_call.1} parent=5 // pred_check
        _
      $region38: #{tpu_custom_call.1} parent=5 // pred_check_branch
        %298 = sbr.rel (%p295) target = $region40
      $region39: #{tpu_custom_call.1} parent=5 // pred_region
        %s299 = ssub.s32 %s21, 1
        // Predicated region
        $region41: #{tpu_custom_call.1} parent=39 // pred_check
          %p300 = pneg %p59
        $region42: #{tpu_custom_call.1} parent=39 // pred_check_branch
          %302 = sbr.rel (%p300) target = $region44
        $region43: #{tpu_custom_call.1} parent=39 // pred_region
          %303 = dma.done [#allocation6], 512
        $region44: #{tpu_custom_call.1} parent=39 // pred_fallthru
          _
        %s304 = sand.u32 %s26, 1
        %s305 = scalar_lea.sflag [#allocation9], %s304
        %s306 = sand.u32 %s72, 1
        %s307 = smul.addr %s306, 1024
        %s308 = scalar_lea.vmem [#allocation8], %s307
        // Predicated region
        $region45: #{tpu_custom_call.1} parent=39 // pred_check
          %p309 = pneg %p85
        $region46: #{tpu_custom_call.1} parent=39 // pred_check_branch
          %311 = sbr.rel (%p309) target = $region48
        $region47: #{tpu_custom_call.1} parent=39 // pred_region
          %312 = dma.done %s305, 16384
        $region48: #{tpu_custom_call.1} parent=39 // pred_fallthru
          _
        %s313 = sand.u32 %s26, 1
        %s314 = scalar_lea.sflag [#allocation9], %s313
        %s315 = sand.u32 %s98, 1
        %s316 = smul.addr %s315, 4
        %s317 = scalar_lea.vmem [#allocation10], %s316
        // Predicated region
        $region49: #{tpu_custom_call.1} parent=39 // pred_check
          %p318 = pneg %p111
        $region50: #{tpu_custom_call.1} parent=39 // pred_check_branch
          %320 = sbr.rel (%p318) target = $region52
        $region51: #{tpu_custom_call.1} parent=39 // pred_region
          %321 = dma.done %s314, 64
        $region52: #{tpu_custom_call.1} parent=39 // pred_fallthru
          _
        %s322 = sand.u32 %s26, 1
        %s323 = scalar_lea.sflag [#allocation12], %s322
        %s324 = sand.u32 %s124, 1
        %s325 = smul.addr %s324, 1024
        %s326 = scalar_lea.vmem [#allocation11], %s325
        // Predicated region
        $region53: #{tpu_custom_call.1} parent=39 // pred_check
          %p327 = pneg %p137
        $region54: #{tpu_custom_call.1} parent=39 // pred_check_branch
          %329 = sbr.rel (%p327) target = $region56
        $region55: #{tpu_custom_call.1} parent=39 // pred_region
          %330 = dma.done %s323, 16384
        $region56: #{tpu_custom_call.1} parent=39 // pred_fallthru
          _
        // Predicated region
        $region57: #{tpu_custom_call.1} parent=39 // pred_check
          %p331 = pneg %p158
        $region58: #{tpu_custom_call.1} parent=39 // pred_check_branch
          %333 = sbr.rel (%p331) target = $region60
        $region59: #{tpu_custom_call.1} parent=39 // pred_region
          %334 = dma.done [#allocation12], 64
        $region60: #{tpu_custom_call.1} parent=39 // pred_fallthru
          _
        %p335 = pneg %p59
        %p336 = pneg %p56
        %s337 = sand.u32 %s26, 1
        %s338 = scalar_lea.sflag [#allocation9], %s337
        %s339 = sand.u32 %s72, 1
        %s340 = smul.addr %s339, 1024
        %s341 = scalar_lea.vmem [#allocation8], %s340
        %p342 = pneg %p85
        %p343 = pneg %p82
        %s344 = sand.u32 %s26, 1
        %s345 = scalar_lea.sflag [#allocation9], %s344
        %s346 = sand.u32 %s98, 1
        %s347 = smul.addr %s346, 4
        %s348 = scalar_lea.vmem [#allocation10], %s347
        %p349 = pneg %p111
        %p350 = pneg %p108
        %s351 = sand.u32 %s26, 1
        %s352 = scalar_lea.sflag [#allocation12], %s351
        %s353 = sand.u32 %s124, 1
        %s354 = smul.addr %s353, 1024
        %s355 = scalar_lea.vmem [#allocation11], %s354
        %p356 = pneg %p137
        %p357 = pneg %p134
        %p358 = pneg %p158
        %p359 = pneg %p155
        %p360 = pneg %p184
        %p361 = pneg %p181
        %s362 = smul.u32 2, %s30
        %s363 = smul.u32 4, %s31
        %s364 = smul.u32 4, %s31
        %s365 = smul.u32 64, %s31
        %s366 = smul.u32 2, %s30
        %p367 = scmp.eq.s32.totalorder %s31, 0
        // Predicated region
        $region61: #{tpu_custom_call.1} parent=39 // pred_check
          %p368 = pneg %p367
        $region62: #{tpu_custom_call.1} parent=39 // pred_check_branch
          %370 = sbr.rel (%p368) target = $region64
        $region63: #{tpu_custom_call.1} parent=39 // pred_region
          %371 = vst [vmem:[#allocation2] sm:$0xff] 0.0
          %372 = vst [vmem:[#allocation2 + $0x8] sm:$0xff] 0.0
          %373 = vst [vmem:[#allocation2 + $0x10] sm:$0xff] 0.0
          %374 = vst [vmem:[#allocation2 + $0x18] sm:$0xff] 0.0
          %375 = vst [vmem:[#allocation2 + $0x20] sm:$0xff] 0.0
          %376 = vst [vmem:[#allocation2 + $0x28] sm:$0xff] 0.0
          %377 = vst [vmem:[#allocation2 + $0x30] sm:$0xff] 0.0
          %378 = vst [vmem:[#allocation2 + $0x38] sm:$0xff] 0.0
        $region64: #{tpu_custom_call.1} parent=39 // pred_fallthru
          _
        %v379 = vld [vmem:[#allocation5] sm:$0xff]
        %v380 = vld [vmem:[#allocation5 + $0x8] sm:$0xff]
        %v381 = vld [vmem:[#allocation5 + $0x10] sm:$0xff]
        %v382 = vld [vmem:[#allocation5 + $0x18] sm:$0xff]
        %v383 = vld [vmem:[%s308] sm:$0xff]
        %v384 = vld [vmem:[%s308 + $0x8] sm:$0xff]
        %v385 = vld [vmem:[%s308 + $0x10] sm:$0xff]
        %v386 = vld [vmem:[%s308 + $0x18] sm:$0xff]
        %v387 = vld [vmem:[%s308 + $0x20] sm:$0xff]
        %v388 = vld [vmem:[%s308 + $0x28] sm:$0xff]
        %v389 = vld [vmem:[%s308 + $0x30] sm:$0xff]
        %v390 = vld [vmem:[%s308 + $0x38] sm:$0xff]
        %v391 = vld [vmem:[%s308 + $0x40] sm:$0xff]
        %v392 = vld [vmem:[%s308 + $0x48] sm:$0xff]
        %v393 = vld [vmem:[%s308 + $0x50] sm:$0xff]
        %v394 = vld [vmem:[%s308 + $0x58] sm:$0xff]
        %v395 = vld [vmem:[%s308 + $0x60] sm:$0xff]
        %v396 = vld [vmem:[%s308 + $0x68] sm:$0xff]
        %v397 = vld [vmem:[%s308 + $0x70] sm:$0xff]
        %v398 = vld [vmem:[%s308 + $0x78] sm:$0xff]
        %v399 = vld [vmem:[%s308 + $0x80] sm:$0xff]
        %v400 = vld [vmem:[%s308 + $0x88] sm:$0xff]
        %v401 = vld [vmem:[%s308 + $0x90] sm:$0xff]
        %v402 = vld [vmem:[%s308 + $0x98] sm:$0xff]
        %v403 = vld [vmem:[%s308 + $0xa0] sm:$0xff]
        %v404 = vld [vmem:[%s308 + $0xa8] sm:$0xff]
        %v405 = vld [vmem:[%s308 + $0xb0] sm:$0xff]
        %v406 = vld [vmem:[%s308 + $0xb8] sm:$0xff]
        %v407 = vld [vmem:[%s308 + $0xc0] sm:$0xff]
        %v408 = vld [vmem:[%s308 + $0xc8] sm:$0xff]
        %v409 = vld [vmem:[%s308 + $0xd0] sm:$0xff]
        %v410 = vld [vmem:[%s308 + $0xd8] sm:$0xff]
        %v411 = vld [vmem:[%s308 + $0xe0] sm:$0xff]
        %v412 = vld [vmem:[%s308 + $0xe8] sm:$0xff]
        %v413 = vld [vmem:[%s308 + $0xf0] sm:$0xff]
        %v414 = vld [vmem:[%s308 + $0xf8] sm:$0xff]
        %v415 = vld [vmem:[%s308 + $0x100] sm:$0xff]
        %v416 = vld [vmem:[%s308 + $0x108] sm:$0xff]
        %v417 = vld [vmem:[%s308 + $0x110] sm:$0xff]
        %v418 = vld [vmem:[%s308 + $0x118] sm:$0xff]
        %v419 = vld [vmem:[%s308 + $0x120] sm:$0xff]
        %v420 = vld [vmem:[%s308 + $0x128] sm:$0xff]
        %v421 = vld [vmem:[%s308 + $0x130] sm:$0xff]
        %v422 = vld [vmem:[%s308 + $0x138] sm:$0xff]
        %v423 = vld [vmem:[%s308 + $0x140] sm:$0xff]
        %v424 = vld [vmem:[%s308 + $0x148] sm:$0xff]
        %v425 = vld [vmem:[%s308 + $0x150] sm:$0xff]
        %v426 = vld [vmem:[%s308 + $0x158] sm:$0xff]
        %v427 = vld [vmem:[%s308 + $0x160] sm:$0xff]
        %v428 = vld [vmem:[%s308 + $0x168] sm:$0xff]
        %v429 = vld [vmem:[%s308 + $0x170] sm:$0xff]
        %v430 = vld [vmem:[%s308 + $0x178] sm:$0xff]
        %v431 = vld [vmem:[%s308 + $0x180] sm:$0xff]
        %v432 = vld [vmem:[%s308 + $0x188] sm:$0xff]
        %v433 = vld [vmem:[%s308 + $0x190] sm:$0xff]
        %v434 = vld [vmem:[%s308 + $0x198] sm:$0xff]
        %v435 = vld [vmem:[%s308 + $0x1a0] sm:$0xff]
        %v436 = vld [vmem:[%s308 + $0x1a8] sm:$0xff]
        %v437 = vld [vmem:[%s308 + $0x1b0] sm:$0xff]
        %v438 = vld [vmem:[%s308 + $0x1b8] sm:$0xff]
        %v439 = vld [vmem:[%s308 + $0x1c0] sm:$0xff]
        %v440 = vld [vmem:[%s308 + $0x1c8] sm:$0xff]
        %v441 = vld [vmem:[%s308 + $0x1d0] sm:$0xff]
        %v442 = vld [vmem:[%s308 + $0x1d8] sm:$0xff]
        %v443 = vld [vmem:[%s308 + $0x1e0] sm:$0xff]
        %v444 = vld [vmem:[%s308 + $0x1e8] sm:$0xff]
        %v445 = vld [vmem:[%s308 + $0x1f0] sm:$0xff]
        %v446 = vld [vmem:[%s308 + $0x1f8] sm:$0xff]
        %v447 = vld [vmem:[%s308 + $0x200] sm:$0xff]
        %v448 = vld [vmem:[%s308 + $0x208] sm:$0xff]
        %v449 = vld [vmem:[%s308 + $0x210] sm:$0xff]
        %v450 = vld [vmem:[%s308 + $0x218] sm:$0xff]
        %v451 = vld [vmem:[%s308 + $0x220] sm:$0xff]
        %v452 = vld [vmem:[%s308 + $0x228] sm:$0xff]
        %v453 = vld [vmem:[%s308 + $0x230] sm:$0xff]
        %v454 = vld [vmem:[%s308 + $0x238] sm:$0xff]
        %v455 = vld [vmem:[%s308 + $0x240] sm:$0xff]
        %v456 = vld [vmem:[%s308 + $0x248] sm:$0xff]
        %v457 = vld [vmem:[%s308 + $0x250] sm:$0xff]
        %v458 = vld [vmem:[%s308 + $0x258] sm:$0xff]
        %v459 = vld [vmem:[%s308 + $0x260] sm:$0xff]
        %v460 = vld [vmem:[%s308 + $0x268] sm:$0xff]
        %v461 = vld [vmem:[%s308 + $0x270] sm:$0xff]
        %v462 = vld [vmem:[%s308 + $0x278] sm:$0xff]
        %v463 = vld [vmem:[%s308 + $0x280] sm:$0xff]
        %v464 = vld [vmem:[%s308 + $0x288] sm:$0xff]
        %v465 = vld [vmem:[%s308 + $0x290] sm:$0xff]
        %v466 = vld [vmem:[%s308 + $0x298] sm:$0xff]
        %v467 = vld [vmem:[%s308 + $0x2a0] sm:$0xff]
        %v468 = vld [vmem:[%s308 + $0x2a8] sm:$0xff]
        %v469 = vld [vmem:[%s308 + $0x2b0] sm:$0xff]
        %v470 = vld [vmem:[%s308 + $0x2b8] sm:$0xff]
        %v471 = vld [vmem:[%s308 + $0x2c0] sm:$0xff]
        %v472 = vld [vmem:[%s308 + $0x2c8] sm:$0xff]
        %v473 = vld [vmem:[%s308 + $0x2d0] sm:$0xff]
        %v474 = vld [vmem:[%s308 + $0x2d8] sm:$0xff]
        %v475 = vld [vmem:[%s308 + $0x2e0] sm:$0xff]
        %v476 = vld [vmem:[%s308 + $0x2e8] sm:$0xff]
        %v477 = vld [vmem:[%s308 + $0x2f0] sm:$0xff]
        %v478 = vld [vmem:[%s308 + $0x2f8] sm:$0xff]
        %v479 = vld [vmem:[%s308 + $0x300] sm:$0xff]
        %v480 = vld [vmem:[%s308 + $0x308] sm:$0xff]
        %v481 = vld [vmem:[%s308 + $0x310] sm:$0xff]
        %v482 = vld [vmem:[%s308 + $0x318] sm:$0xff]
        %v483 = vld [vmem:[%s308 + $0x320] sm:$0xff]
        %v484 = vld [vmem:[%s308 + $0x328] sm:$0xff]
        %v485 = vld [vmem:[%s308 + $0x330] sm:$0xff]
        %v486 = vld [vmem:[%s308 + $0x338] sm:$0xff]
        %v487 = vld [vmem:[%s308 + $0x340] sm:$0xff]
        %v488 = vld [vmem:[%s308 + $0x348] sm:$0xff]
        %v489 = vld [vmem:[%s308 + $0x350] sm:$0xff]
        %v490 = vld [vmem:[%s308 + $0x358] sm:$0xff]
        %v491 = vld [vmem:[%s308 + $0x360] sm:$0xff]
        %v492 = vld [vmem:[%s308 + $0x368] sm:$0xff]
        %v493 = vld [vmem:[%s308 + $0x370] sm:$0xff]
        %v494 = vld [vmem:[%s308 + $0x378] sm:$0xff]
        %v495 = vld [vmem:[%s308 + $0x380] sm:$0xff]
        %v496 = vld [vmem:[%s308 + $0x388] sm:$0xff]
        %v497 = vld [vmem:[%s308 + $0x390] sm:$0xff]
        %v498 = vld [vmem:[%s308 + $0x398] sm:$0xff]
        %v499 = vld [vmem:[%s308 + $0x3a0] sm:$0xff]
        %v500 = vld [vmem:[%s308 + $0x3a8] sm:$0xff]
        %v501 = vld [vmem:[%s308 + $0x3b0] sm:$0xff]
        %v502 = vld [vmem:[%s308 + $0x3b8] sm:$0xff]
        %v503 = vld [vmem:[%s308 + $0x3c0] sm:$0xff]
        %v504 = vld [vmem:[%s308 + $0x3c8] sm:$0xff]
        %v505 = vld [vmem:[%s308 + $0x3d0] sm:$0xff]
        %v506 = vld [vmem:[%s308 + $0x3d8] sm:$0xff]
        %v507 = vld [vmem:[%s308 + $0x3e0] sm:$0xff]
        %v508 = vld [vmem:[%s308 + $0x3e8] sm:$0xff]
        %v509 = vld [vmem:[%s308 + $0x3f0] sm:$0xff]
        %v510 = vld [vmem:[%s308 + $0x3f8] sm:$0xff]
        %v511 = vld [vmem:[%s317] sm:$0xf]
        %v513 = vlaneseq
        %v514 = vshrl.u32 %v513, 7
        %v515 = vsub.s32 0, %v514
        %v516 = vrot.slane %v511, %v515
        %v517 = vlaneseq
        %v518 = vshrl.u32 %v517, 7
        %v519 = vsub.s32 1, %v518
        %v520 = vrot.slane %v511, %v519
        %v521 = vlaneseq
        %v522 = vshrl.u32 %v521, 7
        %v523 = vsub.s32 2, %v522
        %v524 = vrot.slane %v511, %v523
        %v525 = vlaneseq
        %v526 = vshrl.u32 %v525, 7
        %v527 = vsub.s32 3, %v526
        %v528 = vrot.slane %v511, %v527
        %v537 = vunpack.c.l.b16 %v379
        %v538 = vunpack.c.h.b16 %v379
        %v539 = vunpack.c.l.b16 %v380
        %v540 = vunpack.c.h.b16 %v380
        %v541 = vunpack.c.l.b16 %v381
        %v542 = vunpack.c.h.b16 %v381
        %v543 = vunpack.c.l.b16 %v382
        %v544 = vunpack.c.h.b16 %v382
        %v545 = vpack.c.b16 %v541, %v537
        %v546 = vpack.c.b16 %v542, %v538
        %v547 = vpack.c.b16 %v543, %v539
        %v548 = vpack.c.b16 %v544, %v540
        %v681 = vunpack.c.l.b16 %v383
        %v682 = vunpack.c.h.b16 %v383
        %v683 = vunpack.c.l.b16 %v384
        %v684 = vunpack.c.h.b16 %v384
        %v685 = vunpack.c.l.b16 %v385
        %v686 = vunpack.c.h.b16 %v385
        %v687 = vunpack.c.l.b16 %v386
        %v688 = vunpack.c.h.b16 %v386
        %v689 = vunpack.c.l.b16 %v387
        %v690 = vunpack.c.h.b16 %v387
        %v691 = vunpack.c.l.b16 %v388
        %v692 = vunpack.c.h.b16 %v388
        %v693 = vunpack.c.l.b16 %v389
        %v694 = vunpack.c.h.b16 %v389
        %v695 = vunpack.c.l.b16 %v390
        %v696 = vunpack.c.h.b16 %v390
        %v697 = vunpack.c.l.b16 %v391
        %v698 = vunpack.c.h.b16 %v391
        %v699 = vunpack.c.l.b16 %v392
        %v700 = vunpack.c.h.b16 %v392
        %v701 = vunpack.c.l.b16 %v393
        %v702 = vunpack.c.h.b16 %v393
        %v703 = vunpack.c.l.b16 %v394
        %v704 = vunpack.c.h.b16 %v394
        %v705 = vunpack.c.l.b16 %v395
        %v706 = vunpack.c.h.b16 %v395
        %v707 = vunpack.c.l.b16 %v396
        %v708 = vunpack.c.h.b16 %v396
        %v709 = vunpack.c.l.b16 %v397
        %v710 = vunpack.c.h.b16 %v397
        %v711 = vunpack.c.l.b16 %v398
        %v712 = vunpack.c.h.b16 %v398
        %v713 = vunpack.c.l.b16 %v399
        %v714 = vunpack.c.h.b16 %v399
        %v715 = vunpack.c.l.b16 %v400
        %v716 = vunpack.c.h.b16 %v400
        %v717 = vunpack.c.l.b16 %v401
        %v718 = vunpack.c.h.b16 %v401
        %v719 = vunpack.c.l.b16 %v402
        %v720 = vunpack.c.h.b16 %v402
        %v721 = vunpack.c.l.b16 %v403
        %v722 = vunpack.c.h.b16 %v403
        %v723 = vunpack.c.l.b16 %v404
        %v724 = vunpack.c.h.b16 %v404
        %v725 = vunpack.c.l.b16 %v405
        %v726 = vunpack.c.h.b16 %v405
        %v727 = vunpack.c.l.b16 %v406
        %v728 = vunpack.c.h.b16 %v406
        %v729 = vunpack.c.l.b16 %v407
        %v730 = vunpack.c.h.b16 %v407
        %v731 = vunpack.c.l.b16 %v408
        %v732 = vunpack.c.h.b16 %v408
        %v733 = vunpack.c.l.b16 %v409
        %v734 = vunpack.c.h.b16 %v409
        %v735 = vunpack.c.l.b16 %v410
        %v736 = vunpack.c.h.b16 %v410
        %v737 = vunpack.c.l.b16 %v411
        %v738 = vunpack.c.h.b16 %v411
        %v739 = vunpack.c.l.b16 %v412
        %v740 = vunpack.c.h.b16 %v412
        %v741 = vunpack.c.l.b16 %v413
        %v742 = vunpack.c.h.b16 %v413
        %v743 = vunpack.c.l.b16 %v414
        %v744 = vunpack.c.h.b16 %v414
        %v745 = vunpack.c.l.b16 %v415
        %v746 = vunpack.c.h.b16 %v415
        %v747 = vunpack.c.l.b16 %v416
        %v748 = vunpack.c.h.b16 %v416
        %v749 = vunpack.c.l.b16 %v417
        %v750 = vunpack.c.h.b16 %v417
        %v751 = vunpack.c.l.b16 %v418
        %v752 = vunpack.c.h.b16 %v418
        %v753 = vunpack.c.l.b16 %v419
        %v754 = vunpack.c.h.b16 %v419
        %v755 = vunpack.c.l.b16 %v420
        %v756 = vunpack.c.h.b16 %v420
        %v757 = vunpack.c.l.b16 %v421
        %v758 = vunpack.c.h.b16 %v421
        %v759 = vunpack.c.l.b16 %v422
        %v760 = vunpack.c.h.b16 %v422
        %v761 = vunpack.c.l.b16 %v423
        %v762 = vunpack.c.h.b16 %v423
        %v763 = vunpack.c.l.b16 %v424
        %v764 = vunpack.c.h.b16 %v424
        %v765 = vunpack.c.l.b16 %v425
        %v766 = vunpack.c.h.b16 %v425
        %v767 = vunpack.c.l.b16 %v426
        %v768 = vunpack.c.h.b16 %v426
        %v769 = vunpack.c.l.b16 %v427
        %v770 = vunpack.c.h.b16 %v427
        %v771 = vunpack.c.l.b16 %v428
        %v772 = vunpack.c.h.b16 %v428
        %v773 = vunpack.c.l.b16 %v429
        %v774 = vunpack.c.h.b16 %v429
        %v775 = vunpack.c.l.b16 %v430
        %v776 = vunpack.c.h.b16 %v430
        %v777 = vunpack.c.l.b16 %v431
        %v778 = vunpack.c.h.b16 %v431
        %v779 = vunpack.c.l.b16 %v432
        %v780 = vunpack.c.h.b16 %v432
        %v781 = vunpack.c.l.b16 %v433
        %v782 = vunpack.c.h.b16 %v433
        %v783 = vunpack.c.l.b16 %v434
        %v784 = vunpack.c.h.b16 %v434
        %v785 = vunpack.c.l.b16 %v435
        %v786 = vunpack.c.h.b16 %v435
        %v787 = vunpack.c.l.b16 %v436
        %v788 = vunpack.c.h.b16 %v436
        %v789 = vunpack.c.l.b16 %v437
        %v790 = vunpack.c.h.b16 %v437
        %v791 = vunpack.c.l.b16 %v438
        %v792 = vunpack.c.h.b16 %v438
        %v793 = vunpack.c.l.b16 %v439
        %v794 = vunpack.c.h.b16 %v439
        %v795 = vunpack.c.l.b16 %v440
        %v796 = vunpack.c.h.b16 %v440
        %v797 = vunpack.c.l.b16 %v441
        %v798 = vunpack.c.h.b16 %v441
        %v799 = vunpack.c.l.b16 %v442
        %v800 = vunpack.c.h.b16 %v442
        %v801 = vunpack.c.l.b16 %v443
        %v802 = vunpack.c.h.b16 %v443
        %v803 = vunpack.c.l.b16 %v444
        %v804 = vunpack.c.h.b16 %v444
        %v805 = vunpack.c.l.b16 %v445
        %v806 = vunpack.c.h.b16 %v445
        %v807 = vunpack.c.l.b16 %v446
        %v808 = vunpack.c.h.b16 %v446
        %v809 = vunpack.c.l.b16 %v447
        %v810 = vunpack.c.h.b16 %v447
        %v811 = vunpack.c.l.b16 %v448
        %v812 = vunpack.c.h.b16 %v448
        %v813 = vunpack.c.l.b16 %v449
        %v814 = vunpack.c.h.b16 %v449
        %v815 = vunpack.c.l.b16 %v450
        %v816 = vunpack.c.h.b16 %v450
        %v817 = vunpack.c.l.b16 %v451
        %v818 = vunpack.c.h.b16 %v451
        %v819 = vunpack.c.l.b16 %v452
        %v820 = vunpack.c.h.b16 %v452
        %v821 = vunpack.c.l.b16 %v453
        %v822 = vunpack.c.h.b16 %v453
        %v823 = vunpack.c.l.b16 %v454
        %v824 = vunpack.c.h.b16 %v454
        %v825 = vunpack.c.l.b16 %v455
        %v826 = vunpack.c.h.b16 %v455
        %v827 = vunpack.c.l.b16 %v456
        %v828 = vunpack.c.h.b16 %v456
        %v829 = vunpack.c.l.b16 %v457
        %v830 = vunpack.c.h.b16 %v457
        %v831 = vunpack.c.l.b16 %v458
        %v832 = vunpack.c.h.b16 %v458
        %v833 = vunpack.c.l.b16 %v459
        %v834 = vunpack.c.h.b16 %v459
        %v835 = vunpack.c.l.b16 %v460
        %v836 = vunpack.c.h.b16 %v460
        %v837 = vunpack.c.l.b16 %v461
        %v838 = vunpack.c.h.b16 %v461
        %v839 = vunpack.c.l.b16 %v462
        %v840 = vunpack.c.h.b16 %v462
        %v841 = vunpack.c.l.b16 %v463
        %v842 = vunpack.c.h.b16 %v463
        %v843 = vunpack.c.l.b16 %v464
        %v844 = vunpack.c.h.b16 %v464
        %v845 = vunpack.c.l.b16 %v465
        %v846 = vunpack.c.h.b16 %v465
        %v847 = vunpack.c.l.b16 %v466
        %v848 = vunpack.c.h.b16 %v466
        %v849 = vunpack.c.l.b16 %v467
        %v850 = vunpack.c.h.b16 %v467
        %v851 = vunpack.c.l.b16 %v468
        %v852 = vunpack.c.h.b16 %v468
        %v853 = vunpack.c.l.b16 %v469
        %v854 = vunpack.c.h.b16 %v469
        %v855 = vunpack.c.l.b16 %v470
        %v856 = vunpack.c.h.b16 %v470
        %v857 = vunpack.c.l.b16 %v471
        %v858 = vunpack.c.h.b16 %v471
        %v859 = vunpack.c.l.b16 %v472
        %v860 = vunpack.c.h.b16 %v472
        %v861 = vunpack.c.l.b16 %v473
        %v862 = vunpack.c.h.b16 %v473
        %v863 = vunpack.c.l.b16 %v474
        %v864 = vunpack.c.h.b16 %v474
        %v865 = vunpack.c.l.b16 %v475
        %v866 = vunpack.c.h.b16 %v475
        %v867 = vunpack.c.l.b16 %v476
        %v868 = vunpack.c.h.b16 %v476
        %v869 = vunpack.c.l.b16 %v477
        %v870 = vunpack.c.h.b16 %v477
        %v871 = vunpack.c.l.b16 %v478
        %v872 = vunpack.c.h.b16 %v478
        %v873 = vunpack.c.l.b16 %v479
        %v874 = vunpack.c.h.b16 %v479
        %v875 = vunpack.c.l.b16 %v480
        %v876 = vunpack.c.h.b16 %v480
        %v877 = vunpack.c.l.b16 %v481
        %v878 = vunpack.c.h.b16 %v481
        %v879 = vunpack.c.l.b16 %v482
        %v880 = vunpack.c.h.b16 %v482
        %v881 = vunpack.c.l.b16 %v483
        %v882 = vunpack.c.h.b16 %v483
        %v883 = vunpack.c.l.b16 %v484
        %v884 = vunpack.c.h.b16 %v484
        %v885 = vunpack.c.l.b16 %v485
        %v886 = vunpack.c.h.b16 %v485
        %v887 = vunpack.c.l.b16 %v486
        %v888 = vunpack.c.h.b16 %v486
        %v889 = vunpack.c.l.b16 %v487
        %v890 = vunpack.c.h.b16 %v487
        %v891 = vunpack.c.l.b16 %v488
        %v892 = vunpack.c.h.b16 %v488
        %v893 = vunpack.c.l.b16 %v489
        %v894 = vunpack.c.h.b16 %v489
        %v895 = vunpack.c.l.b16 %v490
        %v896 = vunpack.c.h.b16 %v490
        %v897 = vunpack.c.l.b16 %v491
        %v898 = vunpack.c.h.b16 %v491
        %v899 = vunpack.c.l.b16 %v492
        %v900 = vunpack.c.h.b16 %v492
        %v901 = vunpack.c.l.b16 %v493
        %v902 = vunpack.c.h.b16 %v493
        %v903 = vunpack.c.l.b16 %v494
        %v904 = vunpack.c.h.b16 %v494
        %v905 = vunpack.c.l.b16 %v495
        %v906 = vunpack.c.h.b16 %v495
        %v907 = vunpack.c.l.b16 %v496
        %v908 = vunpack.c.h.b16 %v496
        %v909 = vunpack.c.l.b16 %v497
        %v910 = vunpack.c.h.b16 %v497
        %v911 = vunpack.c.l.b16 %v498
        %v912 = vunpack.c.h.b16 %v498
        %v913 = vunpack.c.l.b16 %v499
        %v914 = vunpack.c.h.b16 %v499
        %v915 = vunpack.c.l.b16 %v500
        %v916 = vunpack.c.h.b16 %v500
        %v917 = vunpack.c.l.b16 %v501
        %v918 = vunpack.c.h.b16 %v501
        %v919 = vunpack.c.l.b16 %v502
        %v920 = vunpack.c.h.b16 %v502
        %v921 = vunpack.c.l.b16 %v503
        %v922 = vunpack.c.h.b16 %v503
        %v923 = vunpack.c.l.b16 %v504
        %v924 = vunpack.c.h.b16 %v504
        %v925 = vunpack.c.l.b16 %v505
        %v926 = vunpack.c.h.b16 %v505
        %v927 = vunpack.c.l.b16 %v506
        %v928 = vunpack.c.h.b16 %v506
        %v929 = vunpack.c.l.b16 %v507
        %v930 = vunpack.c.h.b16 %v507
        %v931 = vunpack.c.l.b16 %v508
        %v932 = vunpack.c.h.b16 %v508
        %v933 = vunpack.c.l.b16 %v509
        %v934 = vunpack.c.h.b16 %v509
        %v935 = vunpack.c.l.b16 %v510
        %v936 = vunpack.c.h.b16 %v510
        %v937 = vpack.c.b16 %v685, %v681
        %v938 = vpack.c.b16 %v686, %v682
        %v939 = vpack.c.b16 %v687, %v683
        %v940 = vpack.c.b16 %v688, %v684
        %v941 = vpack.c.b16 %v693, %v689
        %v942 = vpack.c.b16 %v694, %v690
        %v943 = vpack.c.b16 %v695, %v691
        %v944 = vpack.c.b16 %v696, %v692
        %v945 = vpack.c.b16 %v701, %v697
        %v946 = vpack.c.b16 %v702, %v698
        %v947 = vpack.c.b16 %v703, %v699
        %v948 = vpack.c.b16 %v704, %v700
        %v949 = vpack.c.b16 %v709, %v705
        %v950 = vpack.c.b16 %v710, %v706
        %v951 = vpack.c.b16 %v711, %v707
        %v952 = vpack.c.b16 %v712, %v708
        %v953 = vpack.c.b16 %v717, %v713
        %v954 = vpack.c.b16 %v718, %v714
        %v955 = vpack.c.b16 %v719, %v715
        %v956 = vpack.c.b16 %v720, %v716
        %v957 = vpack.c.b16 %v725, %v721
        %v958 = vpack.c.b16 %v726, %v722
        %v959 = vpack.c.b16 %v727, %v723
        %v960 = vpack.c.b16 %v728, %v724
        %v961 = vpack.c.b16 %v733, %v729
        %v962 = vpack.c.b16 %v734, %v730
        %v963 = vpack.c.b16 %v735, %v731
        %v964 = vpack.c.b16 %v736, %v732
        %v965 = vpack.c.b16 %v741, %v737
        %v966 = vpack.c.b16 %v742, %v738
        %v967 = vpack.c.b16 %v743, %v739
        %v968 = vpack.c.b16 %v744, %v740
        %v969 = vpack.c.b16 %v749, %v745
        %v970 = vpack.c.b16 %v750, %v746
        %v971 = vpack.c.b16 %v751, %v747
        %v972 = vpack.c.b16 %v752, %v748
        %v973 = vpack.c.b16 %v757, %v753
        %v974 = vpack.c.b16 %v758, %v754
        %v975 = vpack.c.b16 %v759, %v755
        %v976 = vpack.c.b16 %v760, %v756
        %v977 = vpack.c.b16 %v765, %v761
        %v978 = vpack.c.b16 %v766, %v762
        %v979 = vpack.c.b16 %v767, %v763
        %v980 = vpack.c.b16 %v768, %v764
        %v981 = vpack.c.b16 %v773, %v769
        %v982 = vpack.c.b16 %v774, %v770
        %v983 = vpack.c.b16 %v775, %v771
        %v984 = vpack.c.b16 %v776, %v772
        %v985 = vpack.c.b16 %v781, %v777
        %v986 = vpack.c.b16 %v782, %v778
        %v987 = vpack.c.b16 %v783, %v779
        %v988 = vpack.c.b16 %v784, %v780
        %v989 = vpack.c.b16 %v789, %v785
        %v990 = vpack.c.b16 %v790, %v786
        %v991 = vpack.c.b16 %v791, %v787
        %v992 = vpack.c.b16 %v792, %v788
        %v993 = vpack.c.b16 %v797, %v793
        %v994 = vpack.c.b16 %v798, %v794
        %v995 = vpack.c.b16 %v799, %v795
        %v996 = vpack.c.b16 %v800, %v796
        %v997 = vpack.c.b16 %v805, %v801
        %v998 = vpack.c.b16 %v806, %v802
        %v999 = vpack.c.b16 %v807, %v803
        %v1000 = vpack.c.b16 %v808, %v804
        %v1001 = vpack.c.b16 %v813, %v809
        %v1002 = vpack.c.b16 %v814, %v810
        %v1003 = vpack.c.b16 %v815, %v811
        %v1004 = vpack.c.b16 %v816, %v812
        %v1005 = vpack.c.b16 %v821, %v817
        %v1006 = vpack.c.b16 %v822, %v818
        %v1007 = vpack.c.b16 %v823, %v819
        %v1008 = vpack.c.b16 %v824, %v820
        %v1009 = vpack.c.b16 %v829, %v825
        %v1010 = vpack.c.b16 %v830, %v826
        %v1011 = vpack.c.b16 %v831, %v827
        %v1012 = vpack.c.b16 %v832, %v828
        %v1013 = vpack.c.b16 %v837, %v833
        %v1014 = vpack.c.b16 %v838, %v834
        %v1015 = vpack.c.b16 %v839, %v835
        %v1016 = vpack.c.b16 %v840, %v836
        %v1017 = vpack.c.b16 %v845, %v841
        %v1018 = vpack.c.b16 %v846, %v842
        %v1019 = vpack.c.b16 %v847, %v843
        %v1020 = vpack.c.b16 %v848, %v844
        %v1021 = vpack.c.b16 %v853, %v849
        %v1022 = vpack.c.b16 %v854, %v850
        %v1023 = vpack.c.b16 %v855, %v851
        %v1024 = vpack.c.b16 %v856, %v852
        %v1025 = vpack.c.b16 %v861, %v857
        %v1026 = vpack.c.b16 %v862, %v858
        %v1027 = vpack.c.b16 %v863, %v859
        %v1028 = vpack.c.b16 %v864, %v860
        %v1029 = vpack.c.b16 %v869, %v865
        %v1030 = vpack.c.b16 %v870, %v866
        %v1031 = vpack.c.b16 %v871, %v867
        %v1032 = vpack.c.b16 %v872, %v868
        %v1033 = vpack.c.b16 %v877, %v873
        %v1034 = vpack.c.b16 %v878, %v874
        %v1035 = vpack.c.b16 %v879, %v875
        %v1036 = vpack.c.b16 %v880, %v876
        %v1037 = vpack.c.b16 %v885, %v881
        %v1038 = vpack.c.b16 %v886, %v882
        %v1039 = vpack.c.b16 %v887, %v883
        %v1040 = vpack.c.b16 %v888, %v884
        %v1041 = vpack.c.b16 %v893, %v889
        %v1042 = vpack.c.b16 %v894, %v890
        %v1043 = vpack.c.b16 %v895, %v891
        %v1044 = vpack.c.b16 %v896, %v892
        %v1045 = vpack.c.b16 %v901, %v897
        %v1046 = vpack.c.b16 %v902, %v898
        %v1047 = vpack.c.b16 %v903, %v899
        %v1048 = vpack.c.b16 %v904, %v900
        %v1049 = vpack.c.b16 %v909, %v905
        %v1050 = vpack.c.b16 %v910, %v906
        %v1051 = vpack.c.b16 %v911, %v907
        %v1052 = vpack.c.b16 %v912, %v908
        %v1053 = vpack.c.b16 %v917, %v913
        %v1054 = vpack.c.b16 %v918, %v914
        %v1055 = vpack.c.b16 %v919, %v915
        %v1056 = vpack.c.b16 %v920, %v916
        %v1057 = vpack.c.b16 %v925, %v921
        %v1058 = vpack.c.b16 %v926, %v922
        %v1059 = vpack.c.b16 %v927, %v923
        %v1060 = vpack.c.b16 %v928, %v924
        %v1061 = vpack.c.b16 %v933, %v929
        %v1062 = vpack.c.b16 %v934, %v930
        %v1063 = vpack.c.b16 %v935, %v931
        %v1064 = vpack.c.b16 %v936, %v932
        %1193 = vmatprep.subr.bf16.mxu0 %v938
        %1194 = vmatpush1.bf16.msra.mxu0 %v937
        %1195 = vmatprep.subr.bf16.mxu0 %v942
        %1196 = vmatpush1.bf16.msra.mxu0 %v941
        %1197 = vmatprep.subr.bf16.mxu0 %v946
        %1198 = vmatpush1.bf16.msra.mxu0 %v945
        %1199 = vmatprep.subr.bf16.mxu0 %v950
        %1200 = vmatpush1.bf16.msra.mxu0 %v949
        %1201 = vmatprep.subr.bf16.mxu0 %v954
        %1202 = vmatpush1.bf16.msra.mxu0 %v953
        %1203 = vmatprep.subr.bf16.mxu0 %v958
        %1204 = vmatpush1.bf16.msra.mxu0 %v957
        %1205 = vmatprep.subr.bf16.mxu0 %v962
        %1206 = vmatpush1.bf16.msra.mxu0 %v961
        %1207 = vmatprep.subr.bf16.mxu0 %v966
        %1208 = vmatpush1.bf16.msra.mxu0 %v965
        %1209 = vmatprep.subr.bf16.mxu0 %v970
        %1210 = vmatpush1.bf16.msra.mxu0 %v969
        %1211 = vmatprep.subr.bf16.mxu0 %v974
        %1212 = vmatpush1.bf16.msra.mxu0 %v973
        %1213 = vmatprep.subr.bf16.mxu0 %v978
        %1214 = vmatpush1.bf16.msra.mxu0 %v977
        %1215 = vmatprep.subr.bf16.mxu0 %v982
        %1216 = vmatpush1.bf16.msra.mxu0 %v981
        %1217 = vmatprep.subr.bf16.mxu0 %v986
        %1218 = vmatpush1.bf16.msra.mxu0 %v985
        %1219 = vmatprep.subr.bf16.mxu0 %v990
        %1220 = vmatpush1.bf16.msra.mxu0 %v989
        %1221 = vmatprep.subr.bf16.mxu0 %v994
        %1222 = vmatpush1.bf16.msra.mxu0 %v993
        %1223 = vmatprep.subr.bf16.mxu0 %v998
        %1224 = vmatpush1.bf16.msra.mxu0 %v997
        %1225 = vmatprep.mubr.bf16.mxu0 %v546
        %1226 = vmatmul.mubr.bf16.gmra.mrb[0].mxu0 %v545
        %v1227 = vpop.f32.mrb[0].mxu0
        %v1228 = vadd.f32 %v516, %v1227
        %v1229 = vpop.f32.mrb[0].mxu0
        %v1230 = vadd.f32 %v520, %v1229
        %v1231 = vpop.f32.mrb[0].mxu0
        %v1232 = vadd.f32 %v516, %v1231
        %v1233 = vpop.f32.mrb[0].mxu0
        %v1234 = vadd.f32 %v520, %v1233
        %1235 = vdwg.mxu0
        %1236 = vmatprep.subr.bf16.mxu0 %v1002
        %1237 = vmatpush1.bf16.msra.mxu0 %v1001
        %1238 = vmatprep.subr.bf16.mxu0 %v1006
        %1239 = vmatpush1.bf16.msra.mxu0 %v1005
        %1240 = vmatprep.subr.bf16.mxu0 %v1010
        %1241 = vmatpush1.bf16.msra.mxu0 %v1009
        %1242 = vmatprep.subr.bf16.mxu0 %v1014
        %1243 = vmatpush1.bf16.msra.mxu0 %v1013
        %1244 = vmatprep.subr.bf16.mxu0 %v1018
        %1245 = vmatpush1.bf16.msra.mxu0 %v1017
        %1246 = vmatprep.subr.bf16.mxu0 %v1022
        %1247 = vmatpush1.bf16.msra.mxu0 %v1021
        %1248 = vmatprep.subr.bf16.mxu0 %v1026
        %1249 = vmatpush1.bf16.msra.mxu0 %v1025
        %1250 = vmatprep.subr.bf16.mxu0 %v1030
        %1251 = vmatpush1.bf16.msra.mxu0 %v1029
        %1252 = vmatprep.subr.bf16.mxu0 %v1034
        %1253 = vmatpush1.bf16.msra.mxu0 %v1033
        %1254 = vmatprep.subr.bf16.mxu0 %v1038
        %1255 = vmatpush1.bf16.msra.mxu0 %v1037
        %1256 = vmatprep.subr.bf16.mxu0 %v1042
        %1257 = vmatpush1.bf16.msra.mxu0 %v1041
        %1258 = vmatprep.subr.bf16.mxu0 %v1046
        %1259 = vmatpush1.bf16.msra.mxu0 %v1045
        %1260 = vmatprep.subr.bf16.mxu0 %v1050
        %1261 = vmatpush1.bf16.msra.mxu0 %v1049
        %1262 = vmatprep.subr.bf16.mxu0 %v1054
        %1263 = vmatpush1.bf16.msra.mxu0 %v1053
        %1264 = vmatprep.subr.bf16.mxu0 %v1058
        %1265 = vmatpush1.bf16.msra.mxu0 %v1057
        %1266 = vmatprep.subr.bf16.mxu0 %v1062
        %1267 = vmatpush1.bf16.msra.mxu0 %v1061
        %1268 = vmatprep.mubr.bf16.mxu0 %v548
        %1269 = vmatmul.mubr.bf16.gmra.mrb[0].mxu0 %v547
        %v1270 = vpop.f32.mrb[0].mxu0
        %v1271 = vadd.f32 %v1228, %v1270
        %v1272 = vpop.f32.mrb[0].mxu0
        %v1273 = vadd.f32 %v1230, %v1272
        %v1274 = vpop.f32.mrb[0].mxu0
        %v1275 = vadd.f32 %v1232, %v1274
        %v1276 = vpop.f32.mrb[0].mxu0
        %v1277 = vadd.f32 %v1234, %v1276
        %1278 = vdwg.mxu0
        %1279 = vmatprep.subr.bf16.mxu0 %v940
        %1280 = vmatpush1.bf16.msra.mxu0 %v939
        %1281 = vmatprep.subr.bf16.mxu0 %v944
        %1282 = vmatpush1.bf16.msra.mxu0 %v943
        %1283 = vmatprep.subr.bf16.mxu0 %v948
        %1284 = vmatpush1.bf16.msra.mxu0 %v947
        %1285 = vmatprep.subr.bf16.mxu0 %v952
        %1286 = vmatpush1.bf16.msra.mxu0 %v951
        %1287 = vmatprep.subr.bf16.mxu0 %v956
        %1288 = vmatpush1.bf16.msra.mxu0 %v955
        %1289 = vmatprep.subr.bf16.mxu0 %v960
        %1290 = vmatpush1.bf16.msra.mxu0 %v959
        %1291 = vmatprep.subr.bf16.mxu0 %v964
        %1292 = vmatpush1.bf16.msra.mxu0 %v963
        %1293 = vmatprep.subr.bf16.mxu0 %v968
        %1294 = vmatpush1.bf16.msra.mxu0 %v967
        %1295 = vmatprep.subr.bf16.mxu0 %v972
        %1296 = vmatpush1.bf16.msra.mxu0 %v971
        %1297 = vmatprep.subr.bf16.mxu0 %v976
        %1298 = vmatpush1.bf16.msra.mxu0 %v975
        %1299 = vmatprep.subr.bf16.mxu0 %v980
        %1300 = vmatpush1.bf16.msra.mxu0 %v979
        %1301 = vmatprep.subr.bf16.mxu0 %v984
        %1302 = vmatpush1.bf16.msra.mxu0 %v983
        %1303 = vmatprep.subr.bf16.mxu0 %v988
        %1304 = vmatpush1.bf16.msra.mxu0 %v987
        %1305 = vmatprep.subr.bf16.mxu0 %v992
        %1306 = vmatpush1.bf16.msra.mxu0 %v991
        %1307 = vmatprep.subr.bf16.mxu0 %v996
        %1308 = vmatpush1.bf16.msra.mxu0 %v995
        %1309 = vmatprep.subr.bf16.mxu0 %v1000
        %1310 = vmatpush1.bf16.msra.mxu0 %v999
        %1311 = vmatprep.mubr.bf16.mxu0 %v546
        %1312 = vmatmul.mubr.bf16.gmra.mrb[0].mxu0 %v545
        %v1313 = vpop.f32.mrb[0].mxu0
        %v1314 = vadd.f32 %v524, %v1313
        %v1315 = vpop.f32.mrb[0].mxu0
        %v1316 = vadd.f32 %v528, %v1315
        %v1317 = vpop.f32.mrb[0].mxu0
        %v1318 = vadd.f32 %v524, %v1317
        %v1319 = vpop.f32.mrb[0].mxu0
        %v1320 = vadd.f32 %v528, %v1319
        %1321 = vdwg.mxu0
        %1322 = vmatprep.subr.bf16.mxu0 %v1004
        %1323 = vmatpush1.bf16.msra.mxu0 %v1003
        %1324 = vmatprep.subr.bf16.mxu0 %v1008
        %1325 = vmatpush1.bf16.msra.mxu0 %v1007
        %1326 = vmatprep.subr.bf16.mxu0 %v1012
        %1327 = vmatpush1.bf16.msra.mxu0 %v1011
        %1328 = vmatprep.subr.bf16.mxu0 %v1016
        %1329 = vmatpush1.bf16.msra.mxu0 %v1015
        %1330 = vmatprep.subr.bf16.mxu0 %v1020
        %1331 = vmatpush1.bf16.msra.mxu0 %v1019
        %1332 = vmatprep.subr.bf16.mxu0 %v1024
        %1333 = vmatpush1.bf16.msra.mxu0 %v1023
        %1334 = vmatprep.subr.bf16.mxu0 %v1028
        %1335 = vmatpush1.bf16.msra.mxu0 %v1027
        %1336 = vmatprep.subr.bf16.mxu0 %v1032
        %1337 = vmatpush1.bf16.msra.mxu0 %v1031
        %1338 = vmatprep.subr.bf16.mxu0 %v1036
        %1339 = vmatpush1.bf16.msra.mxu0 %v1035
        %1340 = vmatprep.subr.bf16.mxu0 %v1040
        %1341 = vmatpush1.bf16.msra.mxu0 %v1039
        %1342 = vmatprep.subr.bf16.mxu0 %v1044
        %1343 = vmatpush1.bf16.msra.mxu0 %v1043
        %1344 = vmatprep.subr.bf16.mxu0 %v1048
        %1345 = vmatpush1.bf16.msra.mxu0 %v1047
        %1346 = vmatprep.subr.bf16.mxu0 %v1052
        %1347 = vmatpush1.bf16.msra.mxu0 %v1051
        %1348 = vmatprep.subr.bf16.mxu0 %v1056
        %1349 = vmatpush1.bf16.msra.mxu0 %v1055
        %1350 = vmatprep.subr.bf16.mxu0 %v1060
        %1351 = vmatpush1.bf16.msra.mxu0 %v1059
        %1352 = vmatprep.subr.bf16.mxu0 %v1064
        %1353 = vmatpush1.bf16.msra.mxu0 %v1063
        %1354 = vmatprep.mubr.bf16.mxu0 %v548
        %1355 = vmatmul.mubr.bf16.gmra.mrb[0].mxu0 %v547
        %v1356 = vpop.f32.mrb[0].mxu0
        %v1357 = vadd.f32 %v1314, %v1356
        %v1358 = vpop.f32.mrb[0].mxu0
        %v1359 = vadd.f32 %v1316, %v1358
        %v1360 = vpop.f32.mrb[0].mxu0
        %v1361 = vadd.f32 %v1318, %v1360
        %v1362 = vpop.f32.mrb[0].mxu0
        %v1363 = vadd.f32 %v1320, %v1362
        %1364 = vdwg.mxu0
        %v1365 = vmax.f32 %v1271, 0.0
        %v1366 = vmax.f32 %v1273, 0.0
        %v1367 = vmax.f32 %v1357, 0.0
        %v1368 = vmax.f32 %v1359, 0.0
        %v1369 = vmax.f32 %v1275, 0.0
        %v1370 = vmax.f32 %v1277, 0.0
        %v1371 = vmax.f32 %v1361, 0.0
        %v1372 = vmax.f32 %v1363, 0.0
        %v1373 = vld [vmem:[#allocation2] sm:$0xff]
        %v1374 = vld [vmem:[#allocation2 + $0x8] sm:$0xff]
        %v1375 = vld [vmem:[#allocation2 + $0x10] sm:$0xff]
        %v1376 = vld [vmem:[#allocation2 + $0x18] sm:$0xff]
        %v1377 = vld [vmem:[#allocation2 + $0x20] sm:$0xff]
        %v1378 = vld [vmem:[#allocation2 + $0x28] sm:$0xff]
        %v1379 = vld [vmem:[#allocation2 + $0x30] sm:$0xff]
        %v1380 = vld [vmem:[#allocation2 + $0x38] sm:$0xff]
        %v1381 = vpack.c.bf16 %v1369, %v1365
        %v1382 = vpack.c.bf16 %v1370, %v1366
        %v1383 = vpack.c.bf16 %v1371, %v1367
        %v1384 = vpack.c.bf16 %v1372, %v1368
        %v1385 = vld [vmem:[%s326] sm:$0xff]
        %v1386 = vld [vmem:[%s326 + $0x8] sm:$0xff]
        %v1387 = vld [vmem:[%s326 + $0x10] sm:$0xff]
        %v1388 = vld [vmem:[%s326 + $0x18] sm:$0xff]
        %v1389 = vld [vmem:[%s326 + $0x20] sm:$0xff]
        %v1390 = vld [vmem:[%s326 + $0x28] sm:$0xff]
        %v1391 = vld [vmem:[%s326 + $0x30] sm:$0xff]
        %v1392 = vld [vmem:[%s326 + $0x38] sm:$0xff]
        %v1393 = vld [vmem:[%s326 + $0x40] sm:$0xff]
        %v1394 = vld [vmem:[%s326 + $0x48] sm:$0xff]
        %v1395 = vld [vmem:[%s326 + $0x50] sm:$0xff]
        %v1396 = vld [vmem:[%s326 + $0x58] sm:$0xff]
        %v1397 = vld [vmem:[%s326 + $0x60] sm:$0xff]
        %v1398 = vld [vmem:[%s326 + $0x68] sm:$0xff]
        %v1399 = vld [vmem:[%s326 + $0x70] sm:$0xff]
        %v1400 = vld [vmem:[%s326 + $0x78] sm:$0xff]
        %v1401 = vld [vmem:[%s326 + $0x80] sm:$0xff]
        %v1402 = vld [vmem:[%s326 + $0x88] sm:$0xff]
        %v1403 = vld [vmem:[%s326 + $0x90] sm:$0xff]
        %v1404 = vld [vmem:[%s326 + $0x98] sm:$0xff]
        %v1405 = vld [vmem:[%s326 + $0xa0] sm:$0xff]
        %v1406 = vld [vmem:[%s326 + $0xa8] sm:$0xff]
        %v1407 = vld [vmem:[%s326 + $0xb0] sm:$0xff]
        %v1408 = vld [vmem:[%s326 + $0xb8] sm:$0xff]
        %v1409 = vld [vmem:[%s326 + $0xc0] sm:$0xff]
        %v1410 = vld [vmem:[%s326 + $0xc8] sm:$0xff]
        %v1411 = vld [vmem:[%s326 + $0xd0] sm:$0xff]
        %v1412 = vld [vmem:[%s326 + $0xd8] sm:$0xff]
        %v1413 = vld [vmem:[%s326 + $0xe0] sm:$0xff]
        %v1414 = vld [vmem:[%s326 + $0xe8] sm:$0xff]
        %v1415 = vld [vmem:[%s326 + $0xf0] sm:$0xff]
        %v1416 = vld [vmem:[%s326 + $0xf8] sm:$0xff]
        %v1417 = vld [vmem:[%s326 + $0x100] sm:$0xff]
        %v1418 = vld [vmem:[%s326 + $0x108] sm:$0xff]
        %v1419 = vld [vmem:[%s326 + $0x110] sm:$0xff]
        %v1420 = vld [vmem:[%s326 + $0x118] sm:$0xff]
        %v1421 = vld [vmem:[%s326 + $0x120] sm:$0xff]
        %v1422 = vld [vmem:[%s326 + $0x128] sm:$0xff]
        %v1423 = vld [vmem:[%s326 + $0x130] sm:$0xff]
        %v1424 = vld [vmem:[%s326 + $0x138] sm:$0xff]
        %v1425 = vld [vmem:[%s326 + $0x140] sm:$0xff]
        %v1426 = vld [vmem:[%s326 + $0x148] sm:$0xff]
        %v1427 = vld [vmem:[%s326 + $0x150] sm:$0xff]
        %v1428 = vld [vmem:[%s326 + $0x158] sm:$0xff]
        %v1429 = vld [vmem:[%s326 + $0x160] sm:$0xff]
        %v1430 = vld [vmem:[%s326 + $0x168] sm:$0xff]
        %v1431 = vld [vmem:[%s326 + $0x170] sm:$0xff]
        %v1432 = vld [vmem:[%s326 + $0x178] sm:$0xff]
        %v1433 = vld [vmem:[%s326 + $0x180] sm:$0xff]
        %v1434 = vld [vmem:[%s326 + $0x188] sm:$0xff]
        %v1435 = vld [vmem:[%s326 + $0x190] sm:$0xff]
        %v1436 = vld [vmem:[%s326 + $0x198] sm:$0xff]
        %v1437 = vld [vmem:[%s326 + $0x1a0] sm:$0xff]
        %v1438 = vld [vmem:[%s326 + $0x1a8] sm:$0xff]
        %v1439 = vld [vmem:[%s326 + $0x1b0] sm:$0xff]
        %v1440 = vld [vmem:[%s326 + $0x1b8] sm:$0xff]
        %v1441 = vld [vmem:[%s326 + $0x1c0] sm:$0xff]
        %v1442 = vld [vmem:[%s326 + $0x1c8] sm:$0xff]
        %v1443 = vld [vmem:[%s326 + $0x1d0] sm:$0xff]
        %v1444 = vld [vmem:[%s326 + $0x1d8] sm:$0xff]
        %v1445 = vld [vmem:[%s326 + $0x1e0] sm:$0xff]
        %v1446 = vld [vmem:[%s326 + $0x1e8] sm:$0xff]
        %v1447 = vld [vmem:[%s326 + $0x1f0] sm:$0xff]
        %v1448 = vld [vmem:[%s326 + $0x1f8] sm:$0xff]
        %v1449 = vld [vmem:[%s326 + $0x200] sm:$0xff]
        %v1450 = vld [vmem:[%s326 + $0x208] sm:$0xff]
        %v1451 = vld [vmem:[%s326 + $0x210] sm:$0xff]
        %v1452 = vld [vmem:[%s326 + $0x218] sm:$0xff]
        %v1453 = vld [vmem:[%s326 + $0x220] sm:$0xff]
        %v1454 = vld [vmem:[%s326 + $0x228] sm:$0xff]
        %v1455 = vld [vmem:[%s326 + $0x230] sm:$0xff]
        %v1456 = vld [vmem:[%s326 + $0x238] sm:$0xff]
        %v1457 = vld [vmem:[%s326 + $0x240] sm:$0xff]
        %v1458 = vld [vmem:[%s326 + $0x248] sm:$0xff]
        %v1459 = vld [vmem:[%s326 + $0x250] sm:$0xff]
        %v1460 = vld [vmem:[%s326 + $0x258] sm:$0xff]
        %v1461 = vld [vmem:[%s326 + $0x260] sm:$0xff]
        %v1462 = vld [vmem:[%s326 + $0x268] sm:$0xff]
        %v1463 = vld [vmem:[%s326 + $0x270] sm:$0xff]
        %v1464 = vld [vmem:[%s326 + $0x278] sm:$0xff]
        %v1465 = vld [vmem:[%s326 + $0x280] sm:$0xff]
        %v1466 = vld [vmem:[%s326 + $0x288] sm:$0xff]
        %v1467 = vld [vmem:[%s326 + $0x290] sm:$0xff]
        %v1468 = vld [vmem:[%s326 + $0x298] sm:$0xff]
        %v1469 = vld [vmem:[%s326 + $0x2a0] sm:$0xff]
        %v1470 = vld [vmem:[%s326 + $0x2a8] sm:$0xff]
        %v1471 = vld [vmem:[%s326 + $0x2b0] sm:$0xff]
        %v1472 = vld [vmem:[%s326 + $0x2b8] sm:$0xff]
        %v1473 = vld [vmem:[%s326 + $0x2c0] sm:$0xff]
        %v1474 = vld [vmem:[%s326 + $0x2c8] sm:$0xff]
        %v1475 = vld [vmem:[%s326 + $0x2d0] sm:$0xff]
        %v1476 = vld [vmem:[%s326 + $0x2d8] sm:$0xff]
        %v1477 = vld [vmem:[%s326 + $0x2e0] sm:$0xff]
        %v1478 = vld [vmem:[%s326 + $0x2e8] sm:$0xff]
        %v1479 = vld [vmem:[%s326 + $0x2f0] sm:$0xff]
        %v1480 = vld [vmem:[%s326 + $0x2f8] sm:$0xff]
        %v1481 = vld [vmem:[%s326 + $0x300] sm:$0xff]
        %v1482 = vld [vmem:[%s326 + $0x308] sm:$0xff]
        %v1483 = vld [vmem:[%s326 + $0x310] sm:$0xff]
        %v1484 = vld [vmem:[%s326 + $0x318] sm:$0xff]
        %v1485 = vld [vmem:[%s326 + $0x320] sm:$0xff]
        %v1486 = vld [vmem:[%s326 + $0x328] sm:$0xff]
        %v1487 = vld [vmem:[%s326 + $0x330] sm:$0xff]
        %v1488 = vld [vmem:[%s326 + $0x338] sm:$0xff]
        %v1489 = vld [vmem:[%s326 + $0x340] sm:$0xff]
        %v1490 = vld [vmem:[%s326 + $0x348] sm:$0xff]
        %v1491 = vld [vmem:[%s326 + $0x350] sm:$0xff]
        %v1492 = vld [vmem:[%s326 + $0x358] sm:$0xff]
        %v1493 = vld [vmem:[%s326 + $0x360] sm:$0xff]
        %v1494 = vld [vmem:[%s326 + $0x368] sm:$0xff]
        %v1495 = vld [vmem:[%s326 + $0x370] sm:$0xff]
        %v1496 = vld [vmem:[%s326 + $0x378] sm:$0xff]
        %v1497 = vld [vmem:[%s326 + $0x380] sm:$0xff]
        %v1498 = vld [vmem:[%s326 + $0x388] sm:$0xff]
        %v1499 = vld [vmem:[%s326 + $0x390] sm:$0xff]
        %v1500 = vld [vmem:[%s326 + $0x398] sm:$0xff]
        %v1501 = vld [vmem:[%s326 + $0x3a0] sm:$0xff]
        %v1502 = vld [vmem:[%s326 + $0x3a8] sm:$0xff]
        %v1503 = vld [vmem:[%s326 + $0x3b0] sm:$0xff]
        %v1504 = vld [vmem:[%s326 + $0x3b8] sm:$0xff]
        %v1505 = vld [vmem:[%s326 + $0x3c0] sm:$0xff]
        %v1506 = vld [vmem:[%s326 + $0x3c8] sm:$0xff]
        %v1507 = vld [vmem:[%s326 + $0x3d0] sm:$0xff]
        %v1508 = vld [vmem:[%s326 + $0x3d8] sm:$0xff]
        %v1509 = vld [vmem:[%s326 + $0x3e0] sm:$0xff]
        %v1510 = vld [vmem:[%s326 + $0x3e8] sm:$0xff]
        %v1511 = vld [vmem:[%s326 + $0x3f0] sm:$0xff]
        %v1512 = vld [vmem:[%s326 + $0x3f8] sm:$0xff]
        %v1641 = vunpack.c.l.b16 %v1385
        %v1642 = vunpack.c.h.b16 %v1385
        %v1643 = vunpack.c.l.b16 %v1386
        %v1644 = vunpack.c.h.b16 %v1386
        %v1645 = vunpack.c.l.b16 %v1387
        %v1646 = vunpack.c.h.b16 %v1387
        %v1647 = vunpack.c.l.b16 %v1388
        %v1648 = vunpack.c.h.b16 %v1388
        %v1649 = vunpack.c.l.b16 %v1389
        %v1650 = vunpack.c.h.b16 %v1389
        %v1651 = vunpack.c.l.b16 %v1390
        %v1652 = vunpack.c.h.b16 %v1390
        %v1653 = vunpack.c.l.b16 %v1391
        %v1654 = vunpack.c.h.b16 %v1391
        %v1655 = vunpack.c.l.b16 %v1392
        %v1656 = vunpack.c.h.b16 %v1392
        %v1657 = vunpack.c.l.b16 %v1393
        %v1658 = vunpack.c.h.b16 %v1393
        %v1659 = vunpack.c.l.b16 %v1394
        %v1660 = vunpack.c.h.b16 %v1394
        %v1661 = vunpack.c.l.b16 %v1395
        %v1662 = vunpack.c.h.b16 %v1395
        %v1663 = vunpack.c.l.b16 %v1396
        %v1664 = vunpack.c.h.b16 %v1396
        %v1665 = vunpack.c.l.b16 %v1397
        %v1666 = vunpack.c.h.b16 %v1397
        %v1667 = vunpack.c.l.b16 %v1398
        %v1668 = vunpack.c.h.b16 %v1398
        %v1669 = vunpack.c.l.b16 %v1399
        %v1670 = vunpack.c.h.b16 %v1399
        %v1671 = vunpack.c.l.b16 %v1400
        %v1672 = vunpack.c.h.b16 %v1400
        %v1673 = vunpack.c.l.b16 %v1401
        %v1674 = vunpack.c.h.b16 %v1401
        %v1675 = vunpack.c.l.b16 %v1402
        %v1676 = vunpack.c.h.b16 %v1402
        %v1677 = vunpack.c.l.b16 %v1403
        %v1678 = vunpack.c.h.b16 %v1403
        %v1679 = vunpack.c.l.b16 %v1404
        %v1680 = vunpack.c.h.b16 %v1404
        %v1681 = vunpack.c.l.b16 %v1405
        %v1682 = vunpack.c.h.b16 %v1405
        %v1683 = vunpack.c.l.b16 %v1406
        %v1684 = vunpack.c.h.b16 %v1406
        %v1685 = vunpack.c.l.b16 %v1407
        %v1686 = vunpack.c.h.b16 %v1407
        %v1687 = vunpack.c.l.b16 %v1408
        %v1688 = vunpack.c.h.b16 %v1408
        %v1689 = vunpack.c.l.b16 %v1409
        %v1690 = vunpack.c.h.b16 %v1409
        %v1691 = vunpack.c.l.b16 %v1410
        %v1692 = vunpack.c.h.b16 %v1410
        %v1693 = vunpack.c.l.b16 %v1411
        %v1694 = vunpack.c.h.b16 %v1411
        %v1695 = vunpack.c.l.b16 %v1412
        %v1696 = vunpack.c.h.b16 %v1412
        %v1697 = vunpack.c.l.b16 %v1413
        %v1698 = vunpack.c.h.b16 %v1413
        %v1699 = vunpack.c.l.b16 %v1414
        %v1700 = vunpack.c.h.b16 %v1414
        %v1701 = vunpack.c.l.b16 %v1415
        %v1702 = vunpack.c.h.b16 %v1415
        %v1703 = vunpack.c.l.b16 %v1416
        %v1704 = vunpack.c.h.b16 %v1416
        %v1705 = vunpack.c.l.b16 %v1417
        %v1706 = vunpack.c.h.b16 %v1417
        %v1707 = vunpack.c.l.b16 %v1418
        %v1708 = vunpack.c.h.b16 %v1418
        %v1709 = vunpack.c.l.b16 %v1419
        %v1710 = vunpack.c.h.b16 %v1419
        %v1711 = vunpack.c.l.b16 %v1420
        %v1712 = vunpack.c.h.b16 %v1420
        %v1713 = vunpack.c.l.b16 %v1421
        %v1714 = vunpack.c.h.b16 %v1421
        %v1715 = vunpack.c.l.b16 %v1422
        %v1716 = vunpack.c.h.b16 %v1422
        %v1717 = vunpack.c.l.b16 %v1423
        %v1718 = vunpack.c.h.b16 %v1423
        %v1719 = vunpack.c.l.b16 %v1424
        %v1720 = vunpack.c.h.b16 %v1424
        %v1721 = vunpack.c.l.b16 %v1425
        %v1722 = vunpack.c.h.b16 %v1425
        %v1723 = vunpack.c.l.b16 %v1426
        %v1724 = vunpack.c.h.b16 %v1426
        %v1725 = vunpack.c.l.b16 %v1427
        %v1726 = vunpack.c.h.b16 %v1427
        %v1727 = vunpack.c.l.b16 %v1428
        %v1728 = vunpack.c.h.b16 %v1428
        %v1729 = vunpack.c.l.b16 %v1429
        %v1730 = vunpack.c.h.b16 %v1429
        %v1731 = vunpack.c.l.b16 %v1430
        %v1732 = vunpack.c.h.b16 %v1430
        %v1733 = vunpack.c.l.b16 %v1431
        %v1734 = vunpack.c.h.b16 %v1431
        %v1735 = vunpack.c.l.b16 %v1432
        %v1736 = vunpack.c.h.b16 %v1432
        %v1737 = vunpack.c.l.b16 %v1433
        %v1738 = vunpack.c.h.b16 %v1433
        %v1739 = vunpack.c.l.b16 %v1434
        %v1740 = vunpack.c.h.b16 %v1434
        %v1741 = vunpack.c.l.b16 %v1435
        %v1742 = vunpack.c.h.b16 %v1435
        %v1743 = vunpack.c.l.b16 %v1436
        %v1744 = vunpack.c.h.b16 %v1436
        %v1745 = vunpack.c.l.b16 %v1437
        %v1746 = vunpack.c.h.b16 %v1437
        %v1747 = vunpack.c.l.b16 %v1438
        %v1748 = vunpack.c.h.b16 %v1438
        %v1749 = vunpack.c.l.b16 %v1439
        %v1750 = vunpack.c.h.b16 %v1439
        %v1751 = vunpack.c.l.b16 %v1440
        %v1752 = vunpack.c.h.b16 %v1440
        %v1753 = vunpack.c.l.b16 %v1441
        %v1754 = vunpack.c.h.b16 %v1441
        %v1755 = vunpack.c.l.b16 %v1442
        %v1756 = vunpack.c.h.b16 %v1442
        %v1757 = vunpack.c.l.b16 %v1443
        %v1758 = vunpack.c.h.b16 %v1443
        %v1759 = vunpack.c.l.b16 %v1444
        %v1760 = vunpack.c.h.b16 %v1444
        %v1761 = vunpack.c.l.b16 %v1445
        %v1762 = vunpack.c.h.b16 %v1445
        %v1763 = vunpack.c.l.b16 %v1446
        %v1764 = vunpack.c.h.b16 %v1446
        %v1765 = vunpack.c.l.b16 %v1447
        %v1766 = vunpack.c.h.b16 %v1447
        %v1767 = vunpack.c.l.b16 %v1448
        %v1768 = vunpack.c.h.b16 %v1448
        %v1769 = vunpack.c.l.b16 %v1449
        %v1770 = vunpack.c.h.b16 %v1449
        %v1771 = vunpack.c.l.b16 %v1450
        %v1772 = vunpack.c.h.b16 %v1450
        %v1773 = vunpack.c.l.b16 %v1451
        %v1774 = vunpack.c.h.b16 %v1451
        %v1775 = vunpack.c.l.b16 %v1452
        %v1776 = vunpack.c.h.b16 %v1452
        %v1777 = vunpack.c.l.b16 %v1453
        %v1778 = vunpack.c.h.b16 %v1453
        %v1779 = vunpack.c.l.b16 %v1454
        %v1780 = vunpack.c.h.b16 %v1454
        %v1781 = vunpack.c.l.b16 %v1455
        %v1782 = vunpack.c.h.b16 %v1455
        %v1783 = vunpack.c.l.b16 %v1456
        %v1784 = vunpack.c.h.b16 %v1456
        %v1785 = vunpack.c.l.b16 %v1457
        %v1786 = vunpack.c.h.b16 %v1457
        %v1787 = vunpack.c.l.b16 %v1458
        %v1788 = vunpack.c.h.b16 %v1458
        %v1789 = vunpack.c.l.b16 %v1459
        %v1790 = vunpack.c.h.b16 %v1459
        %v1791 = vunpack.c.l.b16 %v1460
        %v1792 = vunpack.c.h.b16 %v1460
        %v1793 = vunpack.c.l.b16 %v1461
        %v1794 = vunpack.c.h.b16 %v1461
        %v1795 = vunpack.c.l.b16 %v1462
        %v1796 = vunpack.c.h.b16 %v1462
        %v1797 = vunpack.c.l.b16 %v1463
        %v1798 = vunpack.c.h.b16 %v1463
        %v1799 = vunpack.c.l.b16 %v1464
        %v1800 = vunpack.c.h.b16 %v1464
        %v1801 = vunpack.c.l.b16 %v1465
        %v1802 = vunpack.c.h.b16 %v1465
        %v1803 = vunpack.c.l.b16 %v1466
        %v1804 = vunpack.c.h.b16 %v1466
        %v1805 = vunpack.c.l.b16 %v1467
        %v1806 = vunpack.c.h.b16 %v1467
        %v1807 = vunpack.c.l.b16 %v1468
        %v1808 = vunpack.c.h.b16 %v1468
        %v1809 = vunpack.c.l.b16 %v1469
        %v1810 = vunpack.c.h.b16 %v1469
        %v1811 = vunpack.c.l.b16 %v1470
        %v1812 = vunpack.c.h.b16 %v1470
        %v1813 = vunpack.c.l.b16 %v1471
        %v1814 = vunpack.c.h.b16 %v1471
        %v1815 = vunpack.c.l.b16 %v1472
        %v1816 = vunpack.c.h.b16 %v1472
        %v1817 = vunpack.c.l.b16 %v1473
        %v1818 = vunpack.c.h.b16 %v1473
        %v1819 = vunpack.c.l.b16 %v1474
        %v1820 = vunpack.c.h.b16 %v1474
        %v1821 = vunpack.c.l.b16 %v1475
        %v1822 = vunpack.c.h.b16 %v1475
        %v1823 = vunpack.c.l.b16 %v1476
        %v1824 = vunpack.c.h.b16 %v1476
        %v1825 = vunpack.c.l.b16 %v1477
        %v1826 = vunpack.c.h.b16 %v1477
        %v1827 = vunpack.c.l.b16 %v1478
        %v1828 = vunpack.c.h.b16 %v1478
        %v1829 = vunpack.c.l.b16 %v1479
        %v1830 = vunpack.c.h.b16 %v1479
        %v1831 = vunpack.c.l.b16 %v1480
        %v1832 = vunpack.c.h.b16 %v1480
        %v1833 = vunpack.c.l.b16 %v1481
        %v1834 = vunpack.c.h.b16 %v1481
        %v1835 = vunpack.c.l.b16 %v1482
        %v1836 = vunpack.c.h.b16 %v1482
        %v1837 = vunpack.c.l.b16 %v1483
        %v1838 = vunpack.c.h.b16 %v1483
        %v1839 = vunpack.c.l.b16 %v1484
        %v1840 = vunpack.c.h.b16 %v1484
        %v1841 = vunpack.c.l.b16 %v1485
        %v1842 = vunpack.c.h.b16 %v1485
        %v1843 = vunpack.c.l.b16 %v1486
        %v1844 = vunpack.c.h.b16 %v1486
        %v1845 = vunpack.c.l.b16 %v1487
        %v1846 = vunpack.c.h.b16 %v1487
        %v1847 = vunpack.c.l.b16 %v1488
        %v1848 = vunpack.c.h.b16 %v1488
        %v1849 = vunpack.c.l.b16 %v1489
        %v1850 = vunpack.c.h.b16 %v1489
        %v1851 = vunpack.c.l.b16 %v1490
        %v1852 = vunpack.c.h.b16 %v1490
        %v1853 = vunpack.c.l.b16 %v1491
        %v1854 = vunpack.c.h.b16 %v1491
        %v1855 = vunpack.c.l.b16 %v1492
        %v1856 = vunpack.c.h.b16 %v1492
        %v1857 = vunpack.c.l.b16 %v1493
        %v1858 = vunpack.c.h.b16 %v1493
        %v1859 = vunpack.c.l.b16 %v1494
        %v1860 = vunpack.c.h.b16 %v1494
        %v1861 = vunpack.c.l.b16 %v1495
        %v1862 = vunpack.c.h.b16 %v1495
        %v1863 = vunpack.c.l.b16 %v1496
        %v1864 = vunpack.c.h.b16 %v1496
        %v1865 = vunpack.c.l.b16 %v1497
        %v1866 = vunpack.c.h.b16 %v1497
        %v1867 = vunpack.c.l.b16 %v1498
        %v1868 = vunpack.c.h.b16 %v1498
        %v1869 = vunpack.c.l.b16 %v1499
        %v1870 = vunpack.c.h.b16 %v1499
        %v1871 = vunpack.c.l.b16 %v1500
        %v1872 = vunpack.c.h.b16 %v1500
        %v1873 = vunpack.c.l.b16 %v1501
        %v1874 = vunpack.c.h.b16 %v1501
        %v1875 = vunpack.c.l.b16 %v1502
        %v1876 = vunpack.c.h.b16 %v1502
        %v1877 = vunpack.c.l.b16 %v1503
        %v1878 = vunpack.c.h.b16 %v1503
        %v1879 = vunpack.c.l.b16 %v1504
        %v1880 = vunpack.c.h.b16 %v1504
        %v1881 = vunpack.c.l.b16 %v1505
        %v1882 = vunpack.c.h.b16 %v1505
        %v1883 = vunpack.c.l.b16 %v1506
        %v1884 = vunpack.c.h.b16 %v1506
        %v1885 = vunpack.c.l.b16 %v1507
        %v1886 = vunpack.c.h.b16 %v1507
        %v1887 = vunpack.c.l.b16 %v1508
        %v1888 = vunpack.c.h.b16 %v1508
        %v1889 = vunpack.c.l.b16 %v1509
        %v1890 = vunpack.c.h.b16 %v1509
        %v1891 = vunpack.c.l.b16 %v1510
        %v1892 = vunpack.c.h.b16 %v1510
        %v1893 = vunpack.c.l.b16 %v1511
        %v1894 = vunpack.c.h.b16 %v1511
        %v1895 = vunpack.c.l.b16 %v1512
        %v1896 = vunpack.c.h.b16 %v1512
        %v1897 = vpack.c.b16 %v1645, %v1641
        %v1898 = vpack.c.b16 %v1646, %v1642
        %v1899 = vpack.c.b16 %v1647, %v1643
        %v1900 = vpack.c.b16 %v1648, %v1644
        %v1901 = vpack.c.b16 %v1653, %v1649
        %v1902 = vpack.c.b16 %v1654, %v1650
        %v1903 = vpack.c.b16 %v1655, %v1651
        %v1904 = vpack.c.b16 %v1656, %v1652
        %v1905 = vpack.c.b16 %v1661, %v1657
        %v1906 = vpack.c.b16 %v1662, %v1658
        %v1907 = vpack.c.b16 %v1663, %v1659
        %v1908 = vpack.c.b16 %v1664, %v1660
        %v1909 = vpack.c.b16 %v1669, %v1665
        %v1910 = vpack.c.b16 %v1670, %v1666
        %v1911 = vpack.c.b16 %v1671, %v1667
        %v1912 = vpack.c.b16 %v1672, %v1668
        %v1913 = vpack.c.b16 %v1677, %v1673
        %v1914 = vpack.c.b16 %v1678, %v1674
        %v1915 = vpack.c.b16 %v1679, %v1675
        %v1916 = vpack.c.b16 %v1680, %v1676
        %v1917 = vpack.c.b16 %v1685, %v1681
        %v1918 = vpack.c.b16 %v1686, %v1682
        %v1919 = vpack.c.b16 %v1687, %v1683
        %v1920 = vpack.c.b16 %v1688, %v1684
        %v1921 = vpack.c.b16 %v1693, %v1689
        %v1922 = vpack.c.b16 %v1694, %v1690
        %v1923 = vpack.c.b16 %v1695, %v1691
        %v1924 = vpack.c.b16 %v1696, %v1692
        %v1925 = vpack.c.b16 %v1701, %v1697
        %v1926 = vpack.c.b16 %v1702, %v1698
        %v1927 = vpack.c.b16 %v1703, %v1699
        %v1928 = vpack.c.b16 %v1704, %v1700
        %v1929 = vpack.c.b16 %v1709, %v1705
        %v1930 = vpack.c.b16 %v1710, %v1706
        %v1931 = vpack.c.b16 %v1711, %v1707
        %v1932 = vpack.c.b16 %v1712, %v1708
        %v1933 = vpack.c.b16 %v1717, %v1713
        %v1934 = vpack.c.b16 %v1718, %v1714
        %v1935 = vpack.c.b16 %v1719, %v1715
        %v1936 = vpack.c.b16 %v1720, %v1716
        %v1937 = vpack.c.b16 %v1725, %v1721
        %v1938 = vpack.c.b16 %v1726, %v1722
        %v1939 = vpack.c.b16 %v1727, %v1723
        %v1940 = vpack.c.b16 %v1728, %v1724
        %v1941 = vpack.c.b16 %v1733, %v1729
        %v1942 = vpack.c.b16 %v1734, %v1730
        %v1943 = vpack.c.b16 %v1735, %v1731
        %v1944 = vpack.c.b16 %v1736, %v1732
        %v1945 = vpack.c.b16 %v1741, %v1737
        %v1946 = vpack.c.b16 %v1742, %v1738
        %v1947 = vpack.c.b16 %v1743, %v1739
        %v1948 = vpack.c.b16 %v1744, %v1740
        %v1949 = vpack.c.b16 %v1749, %v1745
        %v1950 = vpack.c.b16 %v1750, %v1746
        %v1951 = vpack.c.b16 %v1751, %v1747
        %v1952 = vpack.c.b16 %v1752, %v1748
        %v1953 = vpack.c.b16 %v1757, %v1753
        %v1954 = vpack.c.b16 %v1758, %v1754
        %v1955 = vpack.c.b16 %v1759, %v1755
        %v1956 = vpack.c.b16 %v1760, %v1756
        %v1957 = vpack.c.b16 %v1765, %v1761
        %v1958 = vpack.c.b16 %v1766, %v1762
        %v1959 = vpack.c.b16 %v1767, %v1763
        %v1960 = vpack.c.b16 %v1768, %v1764
        %v1961 = vpack.c.b16 %v1773, %v1769
        %v1962 = vpack.c.b16 %v1774, %v1770
        %v1963 = vpack.c.b16 %v1775, %v1771
        %v1964 = vpack.c.b16 %v1776, %v1772
        %v1965 = vpack.c.b16 %v1781, %v1777
        %v1966 = vpack.c.b16 %v1782, %v1778
        %v1967 = vpack.c.b16 %v1783, %v1779
        %v1968 = vpack.c.b16 %v1784, %v1780
        %v1969 = vpack.c.b16 %v1789, %v1785
        %v1970 = vpack.c.b16 %v1790, %v1786
        %v1971 = vpack.c.b16 %v1791, %v1787
        %v1972 = vpack.c.b16 %v1792, %v1788
        %v1973 = vpack.c.b16 %v1797, %v1793
        %v1974 = vpack.c.b16 %v1798, %v1794
        %v1975 = vpack.c.b16 %v1799, %v1795
        %v1976 = vpack.c.b16 %v1800, %v1796
        %v1977 = vpack.c.b16 %v1805, %v1801
        %v1978 = vpack.c.b16 %v1806, %v1802
        %v1979 = vpack.c.b16 %v1807, %v1803
        %v1980 = vpack.c.b16 %v1808, %v1804
        %v1981 = vpack.c.b16 %v1813, %v1809
        %v1982 = vpack.c.b16 %v1814, %v1810
        %v1983 = vpack.c.b16 %v1815, %v1811
        %v1984 = vpack.c.b16 %v1816, %v1812
        %v1985 = vpack.c.b16 %v1821, %v1817
        %v1986 = vpack.c.b16 %v1822, %v1818
        %v1987 = vpack.c.b16 %v1823, %v1819
        %v1988 = vpack.c.b16 %v1824, %v1820
        %v1989 = vpack.c.b16 %v1829, %v1825
        %v1990 = vpack.c.b16 %v1830, %v1826
        %v1991 = vpack.c.b16 %v1831, %v1827
        %v1992 = vpack.c.b16 %v1832, %v1828
        %v1993 = vpack.c.b16 %v1837, %v1833
        %v1994 = vpack.c.b16 %v1838, %v1834
        %v1995 = vpack.c.b16 %v1839, %v1835
        %v1996 = vpack.c.b16 %v1840, %v1836
        %v1997 = vpack.c.b16 %v1845, %v1841
        %v1998 = vpack.c.b16 %v1846, %v1842
        %v1999 = vpack.c.b16 %v1847, %v1843
        %v2000 = vpack.c.b16 %v1848, %v1844
        %v2001 = vpack.c.b16 %v1853, %v1849
        %v2002 = vpack.c.b16 %v1854, %v1850
        %v2003 = vpack.c.b16 %v1855, %v1851
        %v2004 = vpack.c.b16 %v1856, %v1852
        %v2005 = vpack.c.b16 %v1861, %v1857
        %v2006 = vpack.c.b16 %v1862, %v1858
        %v2007 = vpack.c.b16 %v1863, %v1859
        %v2008 = vpack.c.b16 %v1864, %v1860
        %v2009 = vpack.c.b16 %v1869, %v1865
        %v2010 = vpack.c.b16 %v1870, %v1866
        %v2011 = vpack.c.b16 %v1871, %v1867
        %v2012 = vpack.c.b16 %v1872, %v1868
        %v2013 = vpack.c.b16 %v1877, %v1873
        %v2014 = vpack.c.b16 %v1878, %v1874
        %v2015 = vpack.c.b16 %v1879, %v1875
        %v2016 = vpack.c.b16 %v1880, %v1876
        %v2017 = vpack.c.b16 %v1885, %v1881
        %v2018 = vpack.c.b16 %v1886, %v1882
        %v2019 = vpack.c.b16 %v1887, %v1883
        %v2020 = vpack.c.b16 %v1888, %v1884
        %v2021 = vpack.c.b16 %v1893, %v1889
        %v2022 = vpack.c.b16 %v1894, %v1890
        %v2023 = vpack.c.b16 %v1895, %v1891
        %v2024 = vpack.c.b16 %v1896, %v1892
        %2153 = vmatprep.subr.bf16.mxu0 %v1898
        %2154 = vmatpush1.bf16.msra.mxu0 %v1897
        %2155 = vmatprep.subr.bf16.mxu0 %v1902
        %2156 = vmatpush1.bf16.msra.mxu0 %v1901
        %2157 = vmatprep.subr.bf16.mxu0 %v1906
        %2158 = vmatpush1.bf16.msra.mxu0 %v1905
        %2159 = vmatprep.subr.bf16.mxu0 %v1910
        %2160 = vmatpush1.bf16.msra.mxu0 %v1909
        %2161 = vmatprep.subr.bf16.mxu0 %v1914
        %2162 = vmatpush1.bf16.msra.mxu0 %v1913
        %2163 = vmatprep.subr.bf16.mxu0 %v1918
        %2164 = vmatpush1.bf16.msra.mxu0 %v1917
        %2165 = vmatprep.subr.bf16.mxu0 %v1922
        %2166 = vmatpush1.bf16.msra.mxu0 %v1921
        %2167 = vmatprep.subr.bf16.mxu0 %v1926
        %2168 = vmatpush1.bf16.msra.mxu0 %v1925
        %2169 = vmatprep.subr.bf16.mxu0 %v1930
        %2170 = vmatpush1.bf16.msra.mxu0 %v1929
        %2171 = vmatprep.subr.bf16.mxu0 %v1934
        %2172 = vmatpush1.bf16.msra.mxu0 %v1933
        %2173 = vmatprep.subr.bf16.mxu0 %v1938
        %2174 = vmatpush1.bf16.msra.mxu0 %v1937
        %2175 = vmatprep.subr.bf16.mxu0 %v1942
        %2176 = vmatpush1.bf16.msra.mxu0 %v1941
        %2177 = vmatprep.subr.bf16.mxu0 %v1946
        %2178 = vmatpush1.bf16.msra.mxu0 %v1945
        %2179 = vmatprep.subr.bf16.mxu0 %v1950
        %2180 = vmatpush1.bf16.msra.mxu0 %v1949
        %2181 = vmatprep.subr.bf16.mxu0 %v1954
        %2182 = vmatpush1.bf16.msra.mxu0 %v1953
        %2183 = vmatprep.subr.bf16.mxu0 %v1958
        %2184 = vmatpush1.bf16.msra.mxu0 %v1957
        %2185 = vmatprep.mubr.bf16.mxu0 %v1382
        %2186 = vmatmul.mubr.bf16.gmra.mrb[0].mxu0 %v1381
        %v2187 = vpop.f32.mrb[0].mxu0
        %v2188 = vadd.f32 0.0, %v2187
        %v2189 = vpop.f32.mrb[0].mxu0
        %v2190 = vadd.f32 0.0, %v2189
        %v2191 = vpop.f32.mrb[0].mxu0
        %v2192 = vadd.f32 0.0, %v2191
        %v2193 = vpop.f32.mrb[0].mxu0
        %v2194 = vadd.f32 0.0, %v2193
        %2195 = vdwg.mxu0
        %2196 = vmatprep.subr.bf16.mxu0 %v1962
        %2197 = vmatpush1.bf16.msra.mxu0 %v1961
        %2198 = vmatprep.subr.bf16.mxu0 %v1966
        %2199 = vmatpush1.bf16.msra.mxu0 %v1965
        %2200 = vmatprep.subr.bf16.mxu0 %v1970
        %2201 = vmatpush1.bf16.msra.mxu0 %v1969
        %2202 = vmatprep.subr.bf16.mxu0 %v1974
        %2203 = vmatpush1.bf16.msra.mxu0 %v1973
        %2204 = vmatprep.subr.bf16.mxu0 %v1978
        %2205 = vmatpush1.bf16.msra.mxu0 %v1977
        %2206 = vmatprep.subr.bf16.mxu0 %v1982
        %2207 = vmatpush1.bf16.msra.mxu0 %v1981
        %2208 = vmatprep.subr.bf16.mxu0 %v1986
        %2209 = vmatpush1.bf16.msra.mxu0 %v1985
        %2210 = vmatprep.subr.bf16.mxu0 %v1990
        %2211 = vmatpush1.bf16.msra.mxu0 %v1989
        %2212 = vmatprep.subr.bf16.mxu0 %v1994
        %2213 = vmatpush1.bf16.msra.mxu0 %v1993
        %2214 = vmatprep.subr.bf16.mxu0 %v1998
        %2215 = vmatpush1.bf16.msra.mxu0 %v1997
        %2216 = vmatprep.subr.bf16.mxu0 %v2002
        %2217 = vmatpush1.bf16.msra.mxu0 %v2001
        %2218 = vmatprep.subr.bf16.mxu0 %v2006
        %2219 = vmatpush1.bf16.msra.mxu0 %v2005
        %2220 = vmatprep.subr.bf16.mxu0 %v2010
        %2221 = vmatpush1.bf16.msra.mxu0 %v2009
        %2222 = vmatprep.subr.bf16.mxu0 %v2014
        %2223 = vmatpush1.bf16.msra.mxu0 %v2013
        %2224 = vmatprep.subr.bf16.mxu0 %v2018
        %2225 = vmatpush1.bf16.msra.mxu0 %v2017
        %2226 = vmatprep.subr.bf16.mxu0 %v2022
        %2227 = vmatpush1.bf16.msra.mxu0 %v2021
        %2228 = vmatprep.mubr.bf16.mxu0 %v1384
        %2229 = vmatmul.mubr.bf16.gmra.mrb[0].mxu0 %v1383
        %v2230 = vpop.f32.mrb[0].mxu0
        %v2231 = vadd.f32 %v2188, %v2230
        %v2232 = vpop.f32.mrb[0].mxu0
        %v2233 = vadd.f32 %v2190, %v2232
        %v2234 = vpop.f32.mrb[0].mxu0
        %v2235 = vadd.f32 %v2192, %v2234
        %v2236 = vpop.f32.mrb[0].mxu0
        %v2237 = vadd.f32 %v2194, %v2236
        %2238 = vdwg.mxu0
        %2239 = vmatprep.subr.bf16.mxu0 %v1900
        %2240 = vmatpush1.bf16.msra.mxu0 %v1899
        %2241 = vmatprep.subr.bf16.mxu0 %v1904
        %2242 = vmatpush1.bf16.msra.mxu0 %v1903
        %2243 = vmatprep.subr.bf16.mxu0 %v1908
        %2244 = vmatpush1.bf16.msra.mxu0 %v1907
        %2245 = vmatprep.subr.bf16.mxu0 %v1912
        %2246 = vmatpush1.bf16.msra.mxu0 %v1911
        %2247 = vmatprep.subr.bf16.mxu0 %v1916
        %2248 = vmatpush1.bf16.msra.mxu0 %v1915
        %2249 = vmatprep.subr.bf16.mxu0 %v1920
        %2250 = vmatpush1.bf16.msra.mxu0 %v1919
        %2251 = vmatprep.subr.bf16.mxu0 %v1924
        %2252 = vmatpush1.bf16.msra.mxu0 %v1923
        %2253 = vmatprep.subr.bf16.mxu0 %v1928
        %2254 = vmatpush1.bf16.msra.mxu0 %v1927
        %2255 = vmatprep.subr.bf16.mxu0 %v1932
        %2256 = vmatpush1.bf16.msra.mxu0 %v1931
        %2257 = vmatprep.subr.bf16.mxu0 %v1936
        %2258 = vmatpush1.bf16.msra.mxu0 %v1935
        %2259 = vmatprep.subr.bf16.mxu0 %v1940
        %2260 = vmatpush1.bf16.msra.mxu0 %v1939
        %2261 = vmatprep.subr.bf16.mxu0 %v1944
        %2262 = vmatpush1.bf16.msra.mxu0 %v1943
        %2263 = vmatprep.subr.bf16.mxu0 %v1948
        %2264 = vmatpush1.bf16.msra.mxu0 %v1947
        %2265 = vmatprep.subr.bf16.mxu0 %v1952
        %2266 = vmatpush1.bf16.msra.mxu0 %v1951
        %2267 = vmatprep.subr.bf16.mxu0 %v1956
        %2268 = vmatpush1.bf16.msra.mxu0 %v1955
        %2269 = vmatprep.subr.bf16.mxu0 %v1960
        %2270 = vmatpush1.bf16.msra.mxu0 %v1959
        %2271 = vmatprep.mubr.bf16.mxu0 %v1382
        %2272 = vmatmul.mubr.bf16.gmra.mrb[0].mxu0 %v1381
        %v2273 = vpop.f32.mrb[0].mxu0
        %v2274 = vadd.f32 0.0, %v2273
        %v2275 = vpop.f32.mrb[0].mxu0
        %v2276 = vadd.f32 0.0, %v2275
        %v2277 = vpop.f32.mrb[0].mxu0
        %v2278 = vadd.f32 0.0, %v2277
        %v2279 = vpop.f32.mrb[0].mxu0
        %v2280 = vadd.f32 0.0, %v2279
        %2281 = vdwg.mxu0
        %2282 = vmatprep.subr.bf16.mxu0 %v1964
        %2283 = vmatpush1.bf16.msra.mxu0 %v1963
        %2284 = vmatprep.subr.bf16.mxu0 %v1968
        %2285 = vmatpush1.bf16.msra.mxu0 %v1967
        %2286 = vmatprep.subr.bf16.mxu0 %v1972
        %2287 = vmatpush1.bf16.msra.mxu0 %v1971
        %2288 = vmatprep.subr.bf16.mxu0 %v1976
        %2289 = vmatpush1.bf16.msra.mxu0 %v1975
        %2290 = vmatprep.subr.bf16.mxu0 %v1980
        %2291 = vmatpush1.bf16.msra.mxu0 %v1979
        %2292 = vmatprep.subr.bf16.mxu0 %v1984
        %2293 = vmatpush1.bf16.msra.mxu0 %v1983
        %2294 = vmatprep.subr.bf16.mxu0 %v1988
        %2295 = vmatpush1.bf16.msra.mxu0 %v1987
        %2296 = vmatprep.subr.bf16.mxu0 %v1992
        %2297 = vmatpush1.bf16.msra.mxu0 %v1991
        %2298 = vmatprep.subr.bf16.mxu0 %v1996
        %2299 = vmatpush1.bf16.msra.mxu0 %v1995
        %2300 = vmatprep.subr.bf16.mxu0 %v2000
        %2301 = vmatpush1.bf16.msra.mxu0 %v1999
        %2302 = vmatprep.subr.bf16.mxu0 %v2004
        %2303 = vmatpush1.bf16.msra.mxu0 %v2003
        %2304 = vmatprep.subr.bf16.mxu0 %v2008
        %2305 = vmatpush1.bf16.msra.mxu0 %v2007
        %2306 = vmatprep.subr.bf16.mxu0 %v2012
        %2307 = vmatpush1.bf16.msra.mxu0 %v2011
        %2308 = vmatprep.subr.bf16.mxu0 %v2016
        %2309 = vmatpush1.bf16.msra.mxu0 %v2015
        %2310 = vmatprep.subr.bf16.mxu0 %v2020
        %2311 = vmatpush1.bf16.msra.mxu0 %v2019
        %2312 = vmatprep.subr.bf16.mxu0 %v2024
        %2313 = vmatpush1.bf16.msra.mxu0 %v2023
        %2314 = vmatprep.mubr.bf16.mxu0 %v1384
        %2315 = vmatmul.mubr.bf16.gmra.mrb[0].mxu0 %v1383
        %v2316 = vpop.f32.mrb[0].mxu0
        %v2317 = vadd.f32 %v2274, %v2316
        %v2318 = vpop.f32.mrb[0].mxu0
        %v2319 = vadd.f32 %v2276, %v2318
        %v2320 = vpop.f32.mrb[0].mxu0
        %v2321 = vadd.f32 %v2278, %v2320
        %v2322 = vpop.f32.mrb[0].mxu0
        %v2323 = vadd.f32 %v2280, %v2322
        %2324 = vdwg.mxu0
        %v2325 = vadd.f32 %v1373, %v2231
        %v2326 = vadd.f32 %v1374, %v2233
        %v2327 = vadd.f32 %v1375, %v2317
        %v2328 = vadd.f32 %v1376, %v2319
        %v2329 = vadd.f32 %v1377, %v2235
        %v2330 = vadd.f32 %v1378, %v2237
        %v2331 = vadd.f32 %v1379, %v2321
        %v2332 = vadd.f32 %v1380, %v2323
        %2333 = vst [vmem:[#allocation2] sm:$0xff] %v2325
        %2334 = vst [vmem:[#allocation2 + $0x8] sm:$0xff] %v2326
        %2335 = vst [vmem:[#allocation2 + $0x10] sm:$0xff] %v2327
        %2336 = vst [vmem:[#allocation2 + $0x18] sm:$0xff] %v2328
        %2337 = vst [vmem:[#allocation2 + $0x20] sm:$0xff] %v2329
        %2338 = vst [vmem:[#allocation2 + $0x28] sm:$0xff] %v2330
        %2339 = vst [vmem:[#allocation2 + $0x30] sm:$0xff] %v2331
        %2340 = vst [vmem:[#allocation2 + $0x38] sm:$0xff] %v2332
        %p2341 = scmp.eq.s32.totalorder %s31, 3
        // Predicated region
        $region65: #{tpu_custom_call.1} parent=39 // pred_check
          %p2342 = pneg %p2341
        $region66: #{tpu_custom_call.1} parent=39 // pred_check_branch
          %2344 = sbr.rel (%p2342) target = $region68
        $region67: #{tpu_custom_call.1} parent=39 // pred_region
          %v2345 = vld [vmem:[#allocation2] sm:$0xff]
          %v2346 = vld [vmem:[#allocation2 + $0x8] sm:$0xff]
          %v2347 = vld [vmem:[#allocation2 + $0x10] sm:$0xff]
          %v2348 = vld [vmem:[#allocation2 + $0x18] sm:$0xff]
          %v2349 = vld [vmem:[#allocation2 + $0x20] sm:$0xff]
          %v2350 = vld [vmem:[#allocation2 + $0x28] sm:$0xff]
          %v2351 = vld [vmem:[#allocation2 + $0x30] sm:$0xff]
          %v2352 = vld [vmem:[#allocation2 + $0x38] sm:$0xff]
          %v2353 = vld [vmem:[#allocation13] sm:$0xf]
          %v2355 = vlaneseq
          %v2356 = vshrl.u32 %v2355, 7
          %v2357 = vsub.s32 0, %v2356
          %v2358 = vrot.slane %v2353, %v2357
          %v2359 = vlaneseq
          %v2360 = vshrl.u32 %v2359, 7
          %v2361 = vsub.s32 1, %v2360
          %v2362 = vrot.slane %v2353, %v2361
          %v2363 = vlaneseq
          %v2364 = vshrl.u32 %v2363, 7
          %v2365 = vsub.s32 2, %v2364
          %v2366 = vrot.slane %v2353, %v2365
          %v2367 = vlaneseq
          %v2368 = vshrl.u32 %v2367, 7
          %v2369 = vsub.s32 3, %v2368
          %v2370 = vrot.slane %v2353, %v2369
          %v2375 = vadd.f32 %v2345, %v2358
          %v2376 = vadd.f32 %v2346, %v2362
          %v2377 = vadd.f32 %v2347, %v2366
          %v2378 = vadd.f32 %v2348, %v2370
          %v2379 = vadd.f32 %v2349, %v2358
          %v2380 = vadd.f32 %v2350, %v2362
          %v2381 = vadd.f32 %v2351, %v2366
          %v2382 = vadd.f32 %v2352, %v2370
          %2383 = vst [vmem:[#allocation14] sm:$0xff] %v2375
          %2384 = vst [vmem:[#allocation14 + $0x8] sm:$0xff] %v2376
          %2385 = vst [vmem:[#allocation14 + $0x10] sm:$0xff] %v2377
          %2386 = vst [vmem:[#allocation14 + $0x18] sm:$0xff] %v2378
          %2387 = vst [vmem:[#allocation14 + $0x20] sm:$0xff] %v2379
          %2388 = vst [vmem:[#allocation14 + $0x28] sm:$0xff] %v2380
          %2389 = vst [vmem:[#allocation14 + $0x30] sm:$0xff] %v2381
          %2390 = vst [vmem:[#allocation14 + $0x38] sm:$0xff] %v2382
        $region68: #{tpu_custom_call.1} parent=39 // pred_fallthru
          _
        // Predicated region
        $region69: #{tpu_custom_call.1} parent=39 // pred_check
          %p2391 = pneg %p181
        $region70: #{tpu_custom_call.1} parent=39 // pred_check_branch
          %2393 = sbr.rel (%p2391) target = $region72
        $region71: #{tpu_custom_call.1} parent=39 // pred_region
          %s2394 = smul.u32 2, %s30
          %s2396 = ssub.s32 1024, 1024
          %2397 = vsyncadd [#allocation7], %s2396
          %s2398 = smul.addr %s2394, 4
          %s2399 = smul.addr %s2398, 128
          %s2400 = scalar_lea.hbm %s6, %s2399
          %s2401 = sshll.u32 [#allocation14], 4
          %s2402 = int_to_ptr.vmem [resolvable:$true] %s2401
          %2407 = dma.vmem_to_hbm [thread:$0]  %s2402, 1024, %s2400, [#allocation7], 512, 512, 32
        $region72: #{tpu_custom_call.1} parent=39 // pred_fallthru
          _
        // Predicated region
        $region73: #{tpu_custom_call.1} parent=39 // pred_check
          %p2408 = pneg %p181
        $region74: #{tpu_custom_call.1} parent=39 // pred_check_branch
          %2410 = sbr.rel (%p2408) target = $region76
        $region75: #{tpu_custom_call.1} parent=39 // pred_region
          %2411 = dma.done [#allocation7], 1024
        $region76: #{tpu_custom_call.1} parent=39 // pred_fallthru
          _
      $region40: #{tpu_custom_call.1} parent=5 // pred_fallthru
        _
      %p2412 = scmp.le.s32.totalorder 2, %s21
      // Predicated region
      $region77: #{tpu_custom_call.1} parent=5 // pred_check
        %p2413 = pneg %p2412
      $region78: #{tpu_custom_call.1} parent=5 // pred_check_branch
        %2415 = sbr.rel (%p2413) target = $region80
      $region79: #{tpu_custom_call.1} parent=5 // pred_region
        %s2416 = ssub.s32 %s21, 2
      $region80: #{tpu_custom_call.1} parent=5 // pred_fallthru
        _
    $region6: #{tpu_custom_call.1} parent=1 // loop_footer
      %s25 = sadd.s32 1, %s21
    $region7: #{tpu_custom_call.1} parent=1 // loop_footer_branch
      %20 = sbr.rel target = $region3
    $region8: #{tpu_custom_call.1} parent=1 // loop_exit
      _
    %2417 = vsyncpa [#allocation6], 1
    %s2418 = scalar_lea.sflag [#allocation6], 1
    %2419 = vsyncpa %s2418, 1
    %2420 = vsyncpa [#allocation9], 1
    %s2421 = scalar_lea.sflag [#allocation9], 1
    %2422 = vsyncpa %s2421, 1
    %2423 = vsyncpa [#allocation12], 1
    %s2424 = scalar_lea.sflag [#allocation12], 1
    %2425 = vsyncpa %s2424, 1
    %2426 = vsyncpa [#allocation7], 1
    %s2427 = scalar_lea.sflag [#allocation7], 1
    %2428 = vsyncpa %s2427, 1

</llo_original>
